<compile_context>
chip_gen: v7x
topology: tpu7x:2x2x1
jax: 0.10.0
libtpu: 0.0.40
codegen_flags: <defaults>
</compile_context>

<pallas_src>
import functools

import jax
import jax.numpy as jnp
from jax import lax
from jax.experimental import pallas as pl
from jax.experimental.pallas import tpu as pltpu

_LEAKY_SLOPE = 0.01     # nn.LeakyReLU() default negative_slope
_LANE = 128
_MAX_BLOCK_ROWS = 1024  # per-grid-step batch rows (amortizes ~0.35us/step overhead)


def _round_up(n, m):
    return ((n + m - 1) // m) * m


def actor_critic3_kernel(x_ref, w_ref, b_ref, out_ref):
    """x_ref: (BB, IN8) input block; w_ref: (3, K, K) fused/padded weights;
    b_ref: (3, 1, K) fused biases; out_ref: (BB, OUT8) = [mu | value | pad]."""
    slope = jnp.float32(_LEAKY_SLOPE)
    in8 = x_ref.shape[1]       # static
    out8 = out_ref.shape[1]    # static
    prec = lax.Precision.HIGHEST

    x = x_ref[...]

    # layer 1: (BB, IN8) @ (IN8, K) — actor W1 | critic W1 concatenated on lanes.
    h = jnp.dot(x, w_ref[0, :in8, :], preferred_element_type=jnp.float32,
                precision=prec) + b_ref[0]
    h = jnp.maximum(h, slope * h)          # LeakyReLU (valid for 0 < slope < 1)

    # layer 2: block-diag(actor W2, critic W2).
    h = jnp.dot(h, w_ref[1, :, :], preferred_element_type=jnp.float32,
                precision=prec) + b_ref[1]
    h = jnp.maximum(h, slope * h)

    # layer 3: block-diag(actor W3 (H x A), critic W3 (H x 1)); only the first
    # OUT8 lanes carry data — store just those (tiny masked store vs. 3 MXU passes).
    y = jnp.dot(h, w_ref[2, :, :], preferred_element_type=jnp.float32,
                precision=prec) + b_ref[2]
    out_ref[...] = y[:, :out8]


def pack_actor_critic3_params(actor_params, critic_params):
    """Pack both MLPs into one (3, K, K) weight slab + (3, 1, K) bias slab.
    Call ONCE when parameters change, NOT per forward.  Weights are (in, out),
    biases (out,)."""
    aw1, ab1, aw2, ab2, aw3, ab3 = actor_params
    cw1, cb1, cw2, cb2, cw3, cb3 = critic_params
    num_inputs = aw1.shape[0]
    H = aw1.shape[1]
    A = aw3.shape[1]

    in8 = _round_up(num_inputs, 8)
    out8 = _round_up(A + 1, 8)
    # NOTE: the block-diagonal fusion is only free while in8 / 2*H / out8 fit a
    # single 128-lane tile; for hidden_size >= 128 split layers 2/3 into
    # separate matmuls instead of growing K quadratically with zero blocks.
    K = _round_up(max(in8, 2 * H, out8, 1), _LANE)

    w = jnp.zeros((3, K, K), jnp.float32)
    w = w.at[0, :num_inputs, :H].set(aw1)
    w = w.at[0, :num_inputs, H:2 * H].set(cw1)
    w = w.at[1, :H, :H].set(aw2)
    w = w.at[1, H:2 * H, H:2 * H].set(cw2)
    w = w.at[2, :H, :A].set(aw3)
    w = w.at[2, H:2 * H, A:A + 1].set(cw3)

    b = jnp.zeros((3, 1, K), jnp.float32)
    b = b.at[0, 0, :H].set(ab1.reshape(-1))
    b = b.at[0, 0, H:2 * H].set(cb1.reshape(-1))
    b = b.at[1, 0, :H].set(ab2.reshape(-1))
    b = b.at[1, 0, H:2 * H].set(cb2.reshape(-1))
    b = b.at[2, 0, :A].set(ab3.reshape(-1))
    b = b.at[2, 0, A:A + 1].set(cb3.reshape(-1))
    return w, b


@functools.partial(jax.jit, static_argnames=("num_outputs",))
def actor_critic3_forward(x, w_slab, b_slab, log_std, *, num_outputs):
    """x: (B, num_inputs) f32; (w_slab, b_slab) from pack_actor_critic3_params.
    Returns (mu, std, value) matching ActorCritic3.forward semantics."""
    B, num_inputs = x.shape
    K = w_slab.shape[1]
    in8 = _round_up(num_inputs, 8)
    out8 = _round_up(num_outputs + 1, 8)

    # Batch blocking: <= 1024-row blocks; >= 2 grid steps once B is large
    # enough to shard across v7x's two TensorCores; padding waste stays small
    # for awkward batch sizes.
    n_blocks = -(-B // _MAX_BLOCK_ROWS)
    if B > 256:
        n_blocks = max(n_blocks, 2)
    BB = _round_up(-(-B // n_blocks), 8)
    B_pad = _round_up(B, BB)
    grid = B_pad // BB

    pad_rows = B_pad - B
    pad_cols = in8 - num_inputs
    x_in = x if (pad_rows == 0 and pad_cols == 0) else jnp.pad(
        x, ((0, pad_rows), (0, pad_cols)))

    out = pl.pallas_call(
        actor_critic3_kernel,
        grid=(grid,),
        in_specs=[
            pl.BlockSpec((BB, in8), lambda i: (i, 0)),       # x block per grid step
            pl.BlockSpec((3, K, K), lambda i: (0, 0, 0)),    # weights: resident
            pl.BlockSpec((3, 1, K), lambda i: (0, 0, 0)),    # biases: resident
        ],
        out_specs=pl.BlockSpec((BB, out8), lambda i: (i, 0)),  # narrow output slab
        out_shape=jax.ShapeDtypeStruct((B_pad, out8), jnp.float32),
        compiler_params=pltpu.CompilerParams(
            dimension_semantics=("parallel",),
        ),
    )(x_in, w_slab, b_slab)

    mu = out[:B, :num_outputs]
    value = out[:B, num_outputs:num_outputs + 1]
    # std = self.log_std.exp().expand_as(mu) — trivial elementwise, wrapper-side.
    std = jnp.broadcast_to(jnp.exp(log_std), (B, num_outputs))
    # TODO(synk): torch.distributions.Normal(mu, std) object construction has no
    # Pallas equivalent; caller builds the distribution from (mu, std).
    return mu, std, value


def init_mlp_params(key, num_inputs, hidden_size, num_out):
    """Deterministic synthetic init (small normal weights/biases), (in, out) layout."""
    ks = jax.random.split(key, 6)
    w1 = jax.random.normal(ks[0], (num_inputs, hidden_size), jnp.float32) * 0.1
    b1 = jax.random.normal(ks[1], (hidden_size,), jnp.float32) * 0.01
    w2 = jax.random.normal(ks[2], (hidden_size, hidden_size), jnp.float32) * 0.1
    b2 = jax.random.normal(ks[3], (hidden_size,), jnp.float32) * 0.01
    w3 = jax.random.normal(ks[4], (hidden_size, num_out), jnp.float32) * 0.1
    b3 = jax.random.normal(ks[5], (num_out,), jnp.float32) * 0.01
    return (w1, b1, w2, b2, w3, b3)


def reference_forward(x, actor_params, critic_params, log_std):
    aw1, ab1, aw2, ab2, aw3, ab3 = actor_params
    cw1, cb1, cw2, cb2, cw3, cb3 = critic_params

    def lrelu(t):
        return jnp.where(t > 0, t, _LEAKY_SLOPE * t)

    h = lrelu(x @ aw1 + ab1)
    h = lrelu(h @ aw2 + ab2)
    mu = h @ aw3 + ab3
    g = lrelu(x @ cw1 + cb1)
    g = lrelu(g @ cw2 + cb2)
    value = g @ cw3 + cb3
    std = jnp.broadcast_to(jnp.exp(log_std), mu.shape)
    return mu, std, value


if __name__ == "__main__":
    # Match the pure-JAX reference matmul precision to the kernel's pinned
    # HIGHEST-precision MXU path.
    jax.config.update("jax_default_matmul_precision", "highest")

    key = jax.random.PRNGKey(0)
    k_x, k_a, k_c = jax.random.split(key, 3)

    batch = 8
    num_inputs = 16
    hidden_size = 32
    num_outputs = 4
    std_init = 0.0

    x = jax.random.normal(k_x, (batch, num_inputs), jnp.float32)
    actor_params = init_mlp_params(k_a, num_inputs, hidden_size, num_outputs)
    critic_params = init_mlp_params(k_c, num_inputs, hidden_size, 1)
    log_std = jnp.ones((1, num_outputs), jnp.float32) * std_init

    # Pack once (hoisted out of the per-call path).
    w_slab, b_slab = pack_actor_critic3_params(actor_params, critic_params)

    mu, std, value = actor_critic3_forward(
        x, w_slab, b_slab, log_std, num_outputs=num_outputs)
    jax.block_until_ready((mu, std, value))

    ref_mu, ref_std, ref_value = reference_forward(x, actor_params, critic_params, log_std)
    assert mu.shape == (batch, num_outputs)
    assert std.shape == (batch, num_outputs)
    assert value.shape == (batch, 1)
    assert jnp.allclose(mu, ref_mu, atol=1e-4, rtol=1e-4), "mu mismatch"
    assert jnp.allclose(std, ref_std, atol=1e-6), "std mismatch"
    assert jnp.allclose(value, ref_value, atol=1e-4, rtol=1e-4), "value mismatch"

    print("KERNEL_OK")
</pallas_src>

<mosaic_0001>
module attributes {stable_mosaic.version = 11 : i64} {
  func.func @actor_critic3_kernel(%arg0: i32, %arg1: memref<8x16xf32, #tpu.memory_space<vmem>>, %arg2: memref<3x128x128xf32, #tpu.memory_space<vmem>>, %arg3: memref<3x1x128xf32, #tpu.memory_space<vmem>>, %arg4: memref<8x8xf32, #tpu.memory_space<vmem>>) attributes {dimension_semantics = [#tpu.dimension_semantics<parallel>], iteration_bounds = array<i64: 1>, scalar_prefetch = 0 : i64, scratch_operands = 0 : i64, tpu.core_type = #tpu.core_type<tc>, window_params = [{transform_indices = @transform_0, window_bounds = array<i64: 8, 16>}, {pipeline_mode = #tpu.pipeline_mode<synchronous>, transform_indices = @transform_1, window_bounds = array<i64: 3, 128, 128>}, {pipeline_mode = #tpu.pipeline_mode<synchronous>, transform_indices = @transform_2, window_bounds = array<i64: 3, 1, 128>}, {transform_indices = @transform_3, window_bounds = array<i64: 8, 8>}]} {
    %c0 = arith.constant 0 : index
    %c0_0 = arith.constant 0 : index
    %0 = vector.load %arg1[%c0, %c0_0] : memref<8x16xf32, #tpu.memory_space<vmem>>, vector<8x16xf32>
    %c0_1 = arith.constant 0 : index
    %c0_2 = arith.constant 0 : index
    %c0_3 = arith.constant 0 : index
    %1 = vector.load %arg2[%c0_1, %c0_2, %c0_3] : memref<3x128x128xf32, #tpu.memory_space<vmem>>, vector<1x16x128xf32>
    %2 = vector.shape_cast %1 : vector<1x16x128xf32> to vector<16x128xf32>
    %cst = arith.constant dense<0.000000e+00> : vector<8x128xf32>
    %3 = tpu.matmul %0, %2, %cst {dimension_numbers = #tpu.dot_dimension_numbers<[1], [0], [0], [1], [0, 0, 1, 1], [], []>, precision = #tpu.contract_precision<fp32>} : vector<8x16xf32>, vector<16x128xf32>, vector<8x128xf32> -> vector<8x128xf32>
    %c0_4 = arith.constant 0 : index
    %c0_5 = arith.constant 0 : index
    %c0_6 = arith.constant 0 : index
    %4 = vector.load %arg3[%c0_4, %c0_5, %c0_6] : memref<3x1x128xf32, #tpu.memory_space<vmem>>, vector<1x1x128xf32>
    %5 = vector.shape_cast %4 : vector<1x1x128xf32> to vector<1x128xf32>
    %6 = vector.broadcast %5 : vector<1x128xf32> to vector<8x128xf32>
    %7 = arith.addf %3, %6 : vector<8x128xf32>
    %cst_7 = arith.constant 0.00999999977 : f32
    %8 = vector.broadcast %cst_7 : f32 to vector<8x128xf32>
    %9 = arith.mulf %8, %7 : vector<8x128xf32>
    %10 = arith.maximumf %7, %9 : vector<8x128xf32>
    %c1 = arith.constant 1 : index
    %c0_8 = arith.constant 0 : index
    %c0_9 = arith.constant 0 : index
    %11 = vector.load %arg2[%c1, %c0_8, %c0_9] : memref<3x128x128xf32, #tpu.memory_space<vmem>>, vector<1x128x128xf32>
    %12 = vector.shape_cast %11 : vector<1x128x128xf32> to vector<128x128xf32>
    %cst_10 = arith.constant dense<0.000000e+00> : vector<8x128xf32>
    %13 = tpu.matmul %10, %12, %cst_10 {dimension_numbers = #tpu.dot_dimension_numbers<[1], [0], [0], [1], [0, 0, 1, 1], [], []>, precision = #tpu.contract_precision<fp32>} : vector<8x128xf32>, vector<128x128xf32>, vector<8x128xf32> -> vector<8x128xf32>
    %c1_11 = arith.constant 1 : index
    %c0_12 = arith.constant 0 : index
    %c0_13 = arith.constant 0 : index
    %14 = vector.load %arg3[%c1_11, %c0_12, %c0_13] : memref<3x1x128xf32, #tpu.memory_space<vmem>>, vector<1x1x128xf32>
    %15 = vector.shape_cast %14 : vector<1x1x128xf32> to vector<1x128xf32>
    %16 = vector.broadcast %15 : vector<1x128xf32> to vector<8x128xf32>
    %17 = arith.addf %13, %16 : vector<8x128xf32>
    %cst_14 = arith.constant 0.00999999977 : f32
    %18 = vector.broadcast %cst_14 : f32 to vector<8x128xf32>
    %19 = arith.mulf %18, %17 : vector<8x128xf32>
    %20 = arith.maximumf %17, %19 : vector<8x128xf32>
    %c2 = arith.constant 2 : index
    %c0_15 = arith.constant 0 : index
    %c0_16 = arith.constant 0 : index
    %21 = vector.load %arg2[%c2, %c0_15, %c0_16] : memref<3x128x128xf32, #tpu.memory_space<vmem>>, vector<1x128x128xf32>
    %22 = vector.shape_cast %21 : vector<1x128x128xf32> to vector<128x128xf32>
    %cst_17 = arith.constant dense<0.000000e+00> : vector<8x128xf32>
    %23 = tpu.matmul %20, %22, %cst_17 {dimension_numbers = #tpu.dot_dimension_numbers<[1], [0], [0], [1], [0, 0, 1, 1], [], []>, precision = #tpu.contract_precision<fp32>} : vector<8x128xf32>, vector<128x128xf32>, vector<8x128xf32> -> vector<8x128xf32>
    %c2_18 = arith.constant 2 : index
    %c0_19 = arith.constant 0 : index
    %c0_20 = arith.constant 0 : index
    %24 = vector.load %arg3[%c2_18, %c0_19, %c0_20] : memref<3x1x128xf32, #tpu.memory_space<vmem>>, vector<1x1x128xf32>
    %25 = vector.shape_cast %24 : vector<1x1x128xf32> to vector<1x128xf32>
    %26 = vector.broadcast %25 : vector<1x128xf32> to vector<8x128xf32>
    %27 = arith.addf %23, %26 : vector<8x128xf32>
    %28 = vector.extract_strided_slice %27 {offsets = [0, 0], sizes = [8, 8], strides = [1, 1]} : vector<8x128xf32> to vector<8x8xf32>
    %c0_21 = arith.constant 0 : index
    %c0_22 = arith.constant 0 : index
    %29 = vector.load %arg4[%c0_21, %c0_22] : memref<8x8xf32, #tpu.memory_space<vmem>>, vector<8x8xf32>
    tpu.vector_store %arg4[%c0_21, %c0_22], %28 {strides = array<i32>} : memref<8x8xf32, #tpu.memory_space<vmem>>, vector<8x8xf32>,
    return
  }
  func.func @transform_0(%arg0: i32) -> (i32, i32) {
    %c0_i32 = arith.constant 0 : i32
    %c0_i32_0 = arith.constant 0 : i32
    return %arg0, %c0_i32 : i32, i32
  }
  func.func @transform_1(%arg0: i32) -> (i32, i32, i32) {
    %c0_i32 = arith.constant 0 : i32
    %c0_i32_0 = arith.constant 0 : i32
    %c0_i32_1 = arith.constant 0 : i32
    %c0_i32_2 = arith.constant 0 : i32
    return %c0_i32, %c0_i32_0, %c0_i32_1 : i32, i32, i32
  }
  func.func @transform_2(%arg0: i32) -> (i32, i32, i32) {
    %c0_i32 = arith.constant 0 : i32
    %c0_i32_0 = arith.constant 0 : i32
    %c0_i32_1 = arith.constant 0 : i32
    %c0_i32_2 = arith.constant 0 : i32
    return %c0_i32, %c0_i32_0, %c0_i32_1 : i32, i32, i32
  }
  func.func @transform_3(%arg0: i32) -> (i32, i32) {
    %c0_i32 = arith.constant 0 : i32
    %c0_i32_0 = arith.constant 0 : i32
    return %arg0, %c0_i32 : i32, i32
  }
}

</mosaic_0001>

<llo_original>
// kernel: actor_critic3_forward.1
$region0: #{actor_critic3_forward.1}
  #allocation0 [shape = 'u32[]', space=smem, size = 0x4, offset = 0x4, fixed_abs, tag = 'smem constant byte address 0x4 - core index']
  #allocation1 [shape = 'u32[144,128]{1,0:T(1,128)}', space=vmem, size = 0x12000, scoped, tag = 'internal scratch']
  %s0 = inlined_call_operand.hbm [shape: f32[8,16], index: 0, kind: input, shape index: {}]
  %s1 = inlined_call_operand.hbm [shape: f32[3,128,128], index: 1, kind: input, shape index: {}]
  %s2 = inlined_call_operand.vmem [shape: f32[3,1,128], index: 2, kind: input, shape index: {}]
  %s3 = inlined_call_operand.vmem [shape: f32[8,8], index: 3, kind: output, shape index: {}]
  %s4 = sld [smem:[#allocation0]]
  $region30: #{actor_critic3_forward.1} parent=0
    _
  %s6 = ssub.s32 1, %s4
  %s7 = scalar_select 0, %s6, %s4
  $region1: #{actor_critic3_forward.1} parent=0
    #allocation2 [shape = 'u8[4096]{0}', space=vmem, size = 0x1000, scoped, tag = 'input window, operand 0, single buffered']
    #allocation3 [shape = 's32[1]{0}', space=sflag, size = 0x4, scoped, tag = 'scoped memory for actor_critic3_forward.1']
    #allocation4 [shape = 'u8[196608]{0}', space=vmem, size = 0x30000, scoped, tag = 'input window, operand 1, single buffered']
    #allocation5 [shape = 's32[1]{0}', space=sflag, size = 0x4, scoped, tag = 'scoped memory for actor_critic3_forward.1']
    %8 = vsyncpa [#allocation3], 0
    %9 = vsyncpa [#allocation5], 0
    // Predicated region
    $region2: #{actor_critic3_forward.1} parent=1 // pred_check
      _
    $region3: #{actor_critic3_forward.1} parent=1 // pred_check_branch
      %11 = sbr.rel (0) target = $region5
    $region4: #{actor_critic3_forward.1} parent=1 // pred_region
      %s13 = ssub.s32 128, 128
      %14 = vsyncadd [#allocation3], %s13
      %s16 = sshll.u32 [#allocation2], 4
      %s17 = int_to_ptr.vmem [resolvable:$true] %s16
      %19 = dma.hbm_to_vmem [thread:$0]  %s0, 128, %s17, [#allocation3]
    $region5: #{actor_critic3_forward.1} parent=1 // pred_fallthru
      _
    // Predicated region
    $region6: #{actor_critic3_forward.1} parent=1 // pred_check
      _
    $region7: #{actor_critic3_forward.1} parent=1 // pred_check_branch
      %21 = sbr.rel (0) target = $region9
    $region8: #{actor_critic3_forward.1} parent=1 // pred_region
      %s23 = ssub.s32 6144, 6144
      %24 = vsyncadd [#allocation5], %s23
      %s25 = sshll.u32 [#allocation4], 4
      %s26 = int_to_ptr.vmem [resolvable:$true] %s25
      %31 = dma.hbm_to_vmem [thread:$0]  %s1, 6144, %s26, [#allocation5], 128, 128, 8
    $region9: #{actor_critic3_forward.1} parent=1 // pred_fallthru
      _
    // Predicated region
    $region10: #{actor_critic3_forward.1} parent=1 // pred_check
      _
    $region11: #{actor_critic3_forward.1} parent=1 // pred_check_branch
      %33 = sbr.rel (0) target = $region13
    $region12: #{actor_critic3_forward.1} parent=1 // pred_region
      _
    $region13: #{actor_critic3_forward.1} parent=1 // pred_fallthru
      _
    // Predicated region
    $region14: #{actor_critic3_forward.1} parent=1 // pred_check
      _
    $region15: #{actor_critic3_forward.1} parent=1 // pred_check_branch
      %35 = sbr.rel (0) target = $region17
    $region16: #{actor_critic3_forward.1} parent=1 // pred_region
      %36 = dma.done [#allocation3], 128
    $region17: #{actor_critic3_forward.1} parent=1 // pred_fallthru
      _
    // Predicated region
    $region18: #{actor_critic3_forward.1} parent=1 // pred_check
      _
    $region19: #{actor_critic3_forward.1} parent=1 // pred_check_branch
      %38 = sbr.rel (0) target = $region21
    $region20: #{actor_critic3_forward.1} parent=1 // pred_region
      %39 = dma.done [#allocation5], 6144
    $region21: #{actor_critic3_forward.1} parent=1 // pred_fallthru
      _
    %v40 = vld [vmem:[#allocation2] sm:$0xff]
    %v41 = vld [vmem:[#allocation4] sm:$0xff]
    %v42 = vld [vmem:[#allocation4 + $0x8] sm:$0xff]
    %v43 = vld [vmem:[%s2] sm:$0x1]
    %v45 = vlaneseq
    %v46 = vshrl.u32 %v45, 7
    %v47 = vsub.s32 0, %v46
    %v48 = vrot.slane %v43, %v47
    %vm50 = vcmask 130048
    %v52 = vsel %vm50, %v40, 0
    %54 = vmatprep.subr.mxu0 0.0
    %v55 = vand.u32 %v41, 4294901760
    %56 = vmatpush1.msra.mxu0 %v55
    %57 = vmatprep.subr.mxu0 0.0
    %v58 = vand.u32 %v42, 4294901760
    %59 = vmatpush1.msra.mxu0 %v58
    %60 = vmatprep.subr.mxu0 0.0
    %61 = vmatpush1.msra.mxu0 0.0
    %62 = vmatprep.subr.mxu0 0.0
    %63 = vmatpush1.msra.mxu0 0.0
    %64 = vmatprep.subr.mxu0 0.0
    %65 = vmatpush1.msra.mxu0 0.0
    %66 = vmatprep.subr.mxu0 0.0
    %67 = vmatpush1.msra.mxu0 0.0
    %68 = vmatprep.subr.mxu0 0.0
    %69 = vmatpush1.msra.mxu0 0.0
    %70 = vmatprep.subr.mxu0 0.0
    %71 = vmatpush1.msra.mxu0 0.0
    %72 = vmatprep.subr.mxu0 0.0
    %73 = vmatpush1.msra.mxu0 0.0
    %74 = vmatprep.subr.mxu0 0.0
    %75 = vmatpush1.msra.mxu0 0.0
    %76 = vmatprep.subr.mxu0 0.0
    %77 = vmatpush1.msra.mxu0 0.0
    %78 = vmatprep.subr.mxu0 0.0
    %79 = vmatpush1.msra.mxu0 0.0
    %80 = vmatprep.subr.mxu0 0.0
    %81 = vmatpush1.msra.mxu0 0.0
    %82 = vmatprep.subr.mxu0 0.0
    %83 = vmatpush1.msra.mxu0 0.0
    %84 = vmatprep.subr.mxu0 0.0
    %85 = vmatpush1.msra.mxu0 0.0
    %86 = vmatprep.subr.mxu0 0.0
    %87 = vmatpush1.msra.mxu0 0.0
    %88 = vmatprep.subr.mxu0 0.0
    %89 = vmatpush1.msra.mxu0 0.0
    %90 = vmatprep.subr.mxu0 0.0
    %91 = vmatpush1.msra.mxu0 0.0
    %92 = vmatprep.subr.mxu0 0.0
    %93 = vmatpush1.msra.mxu0 0.0
    %94 = vmatprep.subr.mxu0 0.0
    %95 = vmatpush1.msra.mxu0 0.0
    %96 = vmatprep.subr.mxu0 0.0
    %97 = vmatpush1.msra.mxu0 0.0
    %98 = vmatprep.subr.mxu0 0.0
    %99 = vmatpush1.msra.mxu0 0.0
    %100 = vmatprep.subr.mxu0 0.0
    %101 = vmatpush1.msra.mxu0 0.0
    %102 = vmatprep.subr.mxu0 0.0
    %103 = vmatpush1.msra.mxu0 0.0
    %104 = vmatprep.subr.mxu0 0.0
    %105 = vmatpush1.msra.mxu0 0.0
    %106 = vmatprep.subr.mxu0 0.0
    %107 = vmatpush1.msra.mxu0 0.0
    %108 = vmatprep.subr.mxu0 0.0
    %109 = vmatpush1.msra.mxu0 0.0
    %110 = vmatprep.subr.mxu0 0.0
    %111 = vmatpush1.msra.mxu0 0.0
    %112 = vmatprep.subr.mxu0 0.0
    %113 = vmatpush1.msra.mxu0 0.0
    %114 = vmatprep.subr.mxu0 0.0
    %115 = vmatpush1.msra.mxu0 0.0
    %116 = vmatprep.subr.mxu0 0.0
    %117 = vmatpush1.msra.mxu0 0.0
    %118 = vmatprep.subr.mxu0 0.0
    %119 = vmatpush1.msra.mxu0 0.0
    %120 = vmatprep.mubr.f32.mxu0 0.0
    %v121 = vand.u32 %v52, 4294901760
    %v122 = vsub.f32 %v52, %v121
    %v123 = vand.u32 %v122, 4294901760
    %v124 = vsub.f32 %v122, %v123
    %v125 = vand.u32 %v124, 4294901760
    %126 = vmatmul.mubr.f32.gmra.mrb[0].mxu0 %v125
    %v127 = vpop.f32.mrb[0].mxu0
    %v128 = vadd.f32 %v48, %v127
    %v129 = vpop.f32.mrb[0].mxu0
    %130 = vdwg.mxu0
    %131 = vmatprep.subr.mxu0 0.0
    %v132 = vand.u32 %v41, 4294901760
    %v133 = vsub.f32 %v41, %v132
    %v134 = vand.u32 %v133, 4294901760
    %v135 = vsub.f32 %v133, %v134
    %v136 = vand.u32 %v135, 4294901760
    %137 = vmatpush1.msra.mxu0 %v136
    %138 = vmatprep.subr.mxu0 0.0
    %v139 = vand.u32 %v42, 4294901760
    %v140 = vsub.f32 %v42, %v139
    %v141 = vand.u32 %v140, 4294901760
    %v142 = vsub.f32 %v140, %v141
    %v143 = vand.u32 %v142, 4294901760
    %144 = vmatpush1.msra.mxu0 %v143
    %145 = vmatprep.subr.mxu0 0.0
    %146 = vmatpush1.msra.mxu0 0.0
    %147 = vmatprep.subr.mxu0 0.0
    %148 = vmatpush1.msra.mxu0 0.0
    %149 = vmatprep.subr.mxu0 0.0
    %150 = vmatpush1.msra.mxu0 0.0
    %151 = vmatprep.subr.mxu0 0.0
    %152 = vmatpush1.msra.mxu0 0.0
    %153 = vmatprep.subr.mxu0 0.0
    %154 = vmatpush1.msra.mxu0 0.0
    %155 = vmatprep.subr.mxu0 0.0
    %156 = vmatpush1.msra.mxu0 0.0
    %157 = vmatprep.subr.mxu0 0.0
    %158 = vmatpush1.msra.mxu0 0.0
    %159 = vmatprep.subr.mxu0 0.0
    %160 = vmatpush1.msra.mxu0 0.0
    %161 = vmatprep.subr.mxu0 0.0
    %162 = vmatpush1.msra.mxu0 0.0
    %163 = vmatprep.subr.mxu0 0.0
    %164 = vmatpush1.msra.mxu0 0.0
    %165 = vmatprep.subr.mxu0 0.0
    %166 = vmatpush1.msra.mxu0 0.0
    %167 = vmatprep.subr.mxu0 0.0
    %168 = vmatpush1.msra.mxu0 0.0
    %169 = vmatprep.subr.mxu0 0.0
    %170 = vmatpush1.msra.mxu0 0.0
    %171 = vmatprep.subr.mxu0 0.0
    %172 = vmatpush1.msra.mxu0 0.0
    %173 = vmatprep.subr.mxu0 0.0
    %174 = vmatpush1.msra.mxu0 0.0
    %175 = vmatprep.subr.mxu0 0.0
    %176 = vmatpush1.msra.mxu0 0.0
    %177 = vmatprep.subr.mxu0 0.0
    %178 = vmatpush1.msra.mxu0 0.0
    %179 = vmatprep.subr.mxu0 0.0
    %180 = vmatpush1.msra.mxu0 0.0
    %181 = vmatprep.subr.mxu0 0.0
    %182 = vmatpush1.msra.mxu0 0.0
    %183 = vmatprep.subr.mxu0 0.0
    %184 = vmatpush1.msra.mxu0 0.0
    %185 = vmatprep.subr.mxu0 0.0
    %186 = vmatpush1.msra.mxu0 0.0
    %187 = vmatprep.subr.mxu0 0.0
    %188 = vmatpush1.msra.mxu0 0.0
    %189 = vmatprep.subr.mxu0 0.0
    %190 = vmatpush1.msra.mxu0 0.0
    %191 = vmatprep.subr.mxu0 0.0
    %192 = vmatpush1.msra.mxu0 0.0
    %193 = vmatprep.subr.mxu0 0.0
    %194 = vmatpush1.msra.mxu0 0.0
    %195 = vmatprep.subr.mxu0 0.0
    %196 = vmatpush1.msra.mxu0 0.0
    %197 = vmatprep.subr.mxu0 0.0
    %198 = vmatpush1.msra.mxu0 0.0
    %199 = vmatprep.subr.mxu0 0.0
    %200 = vmatpush1.msra.mxu0 0.0
    %201 = vmatprep.subr.mxu0 0.0
    %202 = vmatpush1.msra.mxu0 0.0
    %203 = vmatprep.subr.mxu0 0.0
    %204 = vmatpush1.msra.mxu0 0.0
    %205 = vmatprep.mubr.f32.mxu0 0.0
    %v206 = vand.u32 %v52, 4294901760
    %207 = vmatmul.mubr.f32.gmra.mrb[0].mxu0 %v206
    %v208 = vpop.f32.mrb[0].mxu0
    %v209 = vadd.f32 %v128, %v208
    %v210 = vpop.f32.mrb[0].mxu0
    %211 = vdwg.mxu0
    %212 = vmatprep.subr.mxu0 0.0
    %v213 = vand.u32 %v41, 4294901760
    %v214 = vsub.f32 %v41, %v213
    %215 = vmatpush1.msra.mxu0 %v214
    %216 = vmatprep.subr.mxu0 0.0
    %v217 = vand.u32 %v42, 4294901760
    %v218 = vsub.f32 %v42, %v217
    %219 = vmatpush1.msra.mxu0 %v218
    %220 = vmatprep.subr.mxu0 0.0
    %221 = vmatpush1.msra.mxu0 0.0
    %222 = vmatprep.subr.mxu0 0.0
    %223 = vmatpush1.msra.mxu0 0.0
    %224 = vmatprep.subr.mxu0 0.0
    %225 = vmatpush1.msra.mxu0 0.0
    %226 = vmatprep.subr.mxu0 0.0
    %227 = vmatpush1.msra.mxu0 0.0
    %228 = vmatprep.subr.mxu0 0.0
    %229 = vmatpush1.msra.mxu0 0.0
    %230 = vmatprep.subr.mxu0 0.0
    %231 = vmatpush1.msra.mxu0 0.0
    %232 = vmatprep.subr.mxu0 0.0
    %233 = vmatpush1.msra.mxu0 0.0
    %234 = vmatprep.subr.mxu0 0.0
    %235 = vmatpush1.msra.mxu0 0.0
    %236 = vmatprep.subr.mxu0 0.0
    %237 = vmatpush1.msra.mxu0 0.0
    %238 = vmatprep.subr.mxu0 0.0
    %239 = vmatpush1.msra.mxu0 0.0
    %240 = vmatprep.subr.mxu0 0.0
    %241 = vmatpush1.msra.mxu0 0.0
    %242 = vmatprep.subr.mxu0 0.0
    %243 = vmatpush1.msra.mxu0 0.0
    %244 = vmatprep.subr.mxu0 0.0
    %245 = vmatpush1.msra.mxu0 0.0
    %246 = vmatprep.subr.mxu0 0.0
    %247 = vmatpush1.msra.mxu0 0.0
    %248 = vmatprep.subr.mxu0 0.0
    %249 = vmatpush1.msra.mxu0 0.0
    %250 = vmatprep.subr.mxu0 0.0
    %251 = vmatpush1.msra.mxu0 0.0
    %252 = vmatprep.subr.mxu0 0.0
    %253 = vmatpush1.msra.mxu0 0.0
    %254 = vmatprep.subr.mxu0 0.0
    %255 = vmatpush1.msra.mxu0 0.0
    %256 = vmatprep.subr.mxu0 0.0
    %257 = vmatpush1.msra.mxu0 0.0
    %258 = vmatprep.subr.mxu0 0.0
    %259 = vmatpush1.msra.mxu0 0.0
    %260 = vmatprep.subr.mxu0 0.0
    %261 = vmatpush1.msra.mxu0 0.0
    %262 = vmatprep.subr.mxu0 0.0
    %263 = vmatpush1.msra.mxu0 0.0
    %264 = vmatprep.subr.mxu0 0.0
    %265 = vmatpush1.msra.mxu0 0.0
    %266 = vmatprep.subr.mxu0 0.0
    %267 = vmatpush1.msra.mxu0 0.0
    %268 = vmatprep.subr.mxu0 0.0
    %269 = vmatpush1.msra.mxu0 0.0
    %270 = vmatprep.subr.mxu0 0.0
    %271 = vmatpush1.msra.mxu0 0.0
    %272 = vmatprep.subr.mxu0 0.0
    %273 = vmatpush1.msra.mxu0 0.0
    %274 = vmatprep.subr.mxu0 0.0
    %275 = vmatpush1.msra.mxu0 0.0
    %276 = vmatprep.subr.mxu0 0.0
    %277 = vmatpush1.msra.mxu0 0.0
    %278 = vmatprep.subr.mxu0 0.0
    %279 = vmatpush1.msra.mxu0 0.0
    %280 = vmatprep.mubr.f32.mxu0 0.0
    %v281 = vand.u32 %v52, 4294901760
    %v282 = vsub.f32 %v52, %v281
    %283 = vmatmul.mubr.f32.gmra.mrb[0].mxu0 %v282
    %v284 = vpop.f32.mrb[0].mxu0
    %v285 = vadd.f32 %v209, %v284
    %v286 = vpop.f32.mrb[0].mxu0
    %287 = vdwg.mxu0
    %288 = vmatprep.subr.mxu0 0.0
    %v289 = vand.u32 %v41, 4294901760
    %290 = vmatpush1.msra.mxu0 %v289
    %291 = vmatprep.subr.mxu0 0.0
    %v292 = vand.u32 %v42, 4294901760
    %293 = vmatpush1.msra.mxu0 %v292
    %294 = vmatprep.subr.mxu0 0.0
    %295 = vmatpush1.msra.mxu0 0.0
    %296 = vmatprep.subr.mxu0 0.0
    %297 = vmatpush1.msra.mxu0 0.0
    %298 = vmatprep.subr.mxu0 0.0
    %299 = vmatpush1.msra.mxu0 0.0
    %300 = vmatprep.subr.mxu0 0.0
    %301 = vmatpush1.msra.mxu0 0.0
    %302 = vmatprep.subr.mxu0 0.0
    %303 = vmatpush1.msra.mxu0 0.0
    %304 = vmatprep.subr.mxu0 0.0
    %305 = vmatpush1.msra.mxu0 0.0
    %306 = vmatprep.subr.mxu0 0.0
    %307 = vmatpush1.msra.mxu0 0.0
    %308 = vmatprep.subr.mxu0 0.0
    %309 = vmatpush1.msra.mxu0 0.0
    %310 = vmatprep.subr.mxu0 0.0
    %311 = vmatpush1.msra.mxu0 0.0
    %312 = vmatprep.subr.mxu0 0.0
    %313 = vmatpush1.msra.mxu0 0.0
    %314 = vmatprep.subr.mxu0 0.0
    %315 = vmatpush1.msra.mxu0 0.0
    %316 = vmatprep.subr.mxu0 0.0
    %317 = vmatpush1.msra.mxu0 0.0
    %318 = vmatprep.subr.mxu0 0.0
    %319 = vmatpush1.msra.mxu0 0.0
    %320 = vmatprep.subr.mxu0 0.0
    %321 = vmatpush1.msra.mxu0 0.0
    %322 = vmatprep.subr.mxu0 0.0
    %323 = vmatpush1.msra.mxu0 0.0
    %324 = vmatprep.subr.mxu0 0.0
    %325 = vmatpush1.msra.mxu0 0.0
    %326 = vmatprep.subr.mxu0 0.0
    %327 = vmatpush1.msra.mxu0 0.0
    %328 = vmatprep.subr.mxu0 0.0
    %329 = vmatpush1.msra.mxu0 0.0
    %330 = vmatprep.subr.mxu0 0.0
    %331 = vmatpush1.msra.mxu0 0.0
    %332 = vmatprep.subr.mxu0 0.0
    %333 = vmatpush1.msra.mxu0 0.0
    %334 = vmatprep.subr.mxu0 0.0
    %335 = vmatpush1.msra.mxu0 0.0
    %336 = vmatprep.subr.mxu0 0.0
    %337 = vmatpush1.msra.mxu0 0.0
    %338 = vmatprep.subr.mxu0 0.0
    %339 = vmatpush1.msra.mxu0 0.0
    %340 = vmatprep.subr.mxu0 0.0
    %341 = vmatpush1.msra.mxu0 0.0
    %342 = vmatprep.subr.mxu0 0.0
    %343 = vmatpush1.msra.mxu0 0.0
    %344 = vmatprep.subr.mxu0 0.0
    %345 = vmatpush1.msra.mxu0 0.0
    %346 = vmatprep.subr.mxu0 0.0
    %347 = vmatpush1.msra.mxu0 0.0
    %348 = vmatprep.subr.mxu0 0.0
    %349 = vmatpush1.msra.mxu0 0.0
    %350 = vmatprep.subr.mxu0 0.0
    %351 = vmatpush1.msra.mxu0 0.0
    %352 = vmatprep.subr.mxu0 0.0
    %353 = vmatpush1.msra.mxu0 0.0
    %354 = vmatprep.mubr.f32.mxu0 0.0
    %v355 = vand.u32 %v52, 4294901760
    %v356 = vsub.f32 %v52, %v355
    %v357 = vand.u32 %v356, 4294901760
    %358 = vmatmul.mubr.f32.gmra.mrb[0].mxu0 %v357
    %v359 = vpop.f32.mrb[0].mxu0
    %v360 = vadd.f32 %v285, %v359
    %v361 = vpop.f32.mrb[0].mxu0
    %362 = vdwg.mxu0
    %363 = vmatprep.subr.mxu0 0.0
    %v364 = vand.u32 %v41, 4294901760
    %v365 = vsub.f32 %v41, %v364
    %v366 = vand.u32 %v365, 4294901760
    %367 = vmatpush1.msra.mxu0 %v366
    %368 = vmatprep.subr.mxu0 0.0
    %v369 = vand.u32 %v42, 4294901760
    %v370 = vsub.f32 %v42, %v369
    %v371 = vand.u32 %v370, 4294901760
    %372 = vmatpush1.msra.mxu0 %v371
    %373 = vmatprep.subr.mxu0 0.0
    %374 = vmatpush1.msra.mxu0 0.0
    %375 = vmatprep.subr.mxu0 0.0
    %376 = vmatpush1.msra.mxu0 0.0
    %377 = vmatprep.subr.mxu0 0.0
    %378 = vmatpush1.msra.mxu0 0.0
    %379 = vmatprep.subr.mxu0 0.0
    %380 = vmatpush1.msra.mxu0 0.0
    %381 = vmatprep.subr.mxu0 0.0
    %382 = vmatpush1.msra.mxu0 0.0
    %383 = vmatprep.subr.mxu0 0.0
    %384 = vmatpush1.msra.mxu0 0.0
    %385 = vmatprep.subr.mxu0 0.0
    %386 = vmatpush1.msra.mxu0 0.0
    %387 = vmatprep.subr.mxu0 0.0
    %388 = vmatpush1.msra.mxu0 0.0
    %389 = vmatprep.subr.mxu0 0.0
    %390 = vmatpush1.msra.mxu0 0.0
    %391 = vmatprep.subr.mxu0 0.0
    %392 = vmatpush1.msra.mxu0 0.0
    %393 = vmatprep.subr.mxu0 0.0
    %394 = vmatpush1.msra.mxu0 0.0
    %395 = vmatprep.subr.mxu0 0.0
    %396 = vmatpush1.msra.mxu0 0.0
    %397 = vmatprep.subr.mxu0 0.0
    %398 = vmatpush1.msra.mxu0 0.0
    %399 = vmatprep.subr.mxu0 0.0
    %400 = vmatpush1.msra.mxu0 0.0
    %401 = vmatprep.subr.mxu0 0.0
    %402 = vmatpush1.msra.mxu0 0.0
    %403 = vmatprep.subr.mxu0 0.0
    %404 = vmatpush1.msra.mxu0 0.0
    %405 = vmatprep.subr.mxu0 0.0
    %406 = vmatpush1.msra.mxu0 0.0
    %407 = vmatprep.subr.mxu0 0.0
    %408 = vmatpush1.msra.mxu0 0.0
    %409 = vmatprep.subr.mxu0 0.0
    %410 = vmatpush1.msra.mxu0 0.0
    %411 = vmatprep.subr.mxu0 0.0
    %412 = vmatpush1.msra.mxu0 0.0
    %413 = vmatprep.subr.mxu0 0.0
    %414 = vmatpush1.msra.mxu0 0.0
    %415 = vmatprep.subr.mxu0 0.0
    %416 = vmatpush1.msra.mxu0 0.0
    %417 = vmatprep.subr.mxu0 0.0
    %418 = vmatpush1.msra.mxu0 0.0
    %419 = vmatprep.subr.mxu0 0.0
    %420 = vmatpush1.msra.mxu0 0.0
    %421 = vmatprep.subr.mxu0 0.0
    %422 = vmatpush1.msra.mxu0 0.0
    %423 = vmatprep.subr.mxu0 0.0
    %424 = vmatpush1.msra.mxu0 0.0
    %425 = vmatprep.subr.mxu0 0.0
    %426 = vmatpush1.msra.mxu0 0.0
    %427 = vmatprep.subr.mxu0 0.0
    %428 = vmatpush1.msra.mxu0 0.0
    %429 = vmatprep.subr.mxu0 0.0
    %430 = vmatpush1.msra.mxu0 0.0
    %431 = vmatprep.subr.mxu0 0.0
    %432 = vmatpush1.msra.mxu0 0.0
    %433 = vmatprep.mubr.f32.mxu0 0.0
    %v434 = vand.u32 %v52, 4294901760
    %435 = vmatmul.mubr.f32.gmra.mrb[0].mxu0 %v434
    %v436 = vpop.f32.mrb[0].mxu0
    %v437 = vadd.f32 %v360, %v436
    %v438 = vpop.f32.mrb[0].mxu0
    %439 = vdwg.mxu0
    %440 = vmatprep.subr.mxu0 0.0
    %v441 = vand.u32 %v41, 4294901760
    %442 = vmatpush1.msra.mxu0 %v441
    %443 = vmatprep.subr.mxu0 0.0
    %v444 = vand.u32 %v42, 4294901760
    %445 = vmatpush1.msra.mxu0 %v444
    %446 = vmatprep.subr.mxu0 0.0
    %447 = vmatpush1.msra.mxu0 0.0
    %448 = vmatprep.subr.mxu0 0.0
    %449 = vmatpush1.msra.mxu0 0.0
    %450 = vmatprep.subr.mxu0 0.0
    %451 = vmatpush1.msra.mxu0 0.0
    %452 = vmatprep.subr.mxu0 0.0
    %453 = vmatpush1.msra.mxu0 0.0
    %454 = vmatprep.subr.mxu0 0.0
    %455 = vmatpush1.msra.mxu0 0.0
    %456 = vmatprep.subr.mxu0 0.0
    %457 = vmatpush1.msra.mxu0 0.0
    %458 = vmatprep.subr.mxu0 0.0
    %459 = vmatpush1.msra.mxu0 0.0
    %460 = vmatprep.subr.mxu0 0.0
    %461 = vmatpush1.msra.mxu0 0.0
    %462 = vmatprep.subr.mxu0 0.0
    %463 = vmatpush1.msra.mxu0 0.0
    %464 = vmatprep.subr.mxu0 0.0
    %465 = vmatpush1.msra.mxu0 0.0
    %466 = vmatprep.subr.mxu0 0.0
    %467 = vmatpush1.msra.mxu0 0.0
    %468 = vmatprep.subr.mxu0 0.0
    %469 = vmatpush1.msra.mxu0 0.0
    %470 = vmatprep.subr.mxu0 0.0
    %471 = vmatpush1.msra.mxu0 0.0
    %472 = vmatprep.subr.mxu0 0.0
    %473 = vmatpush1.msra.mxu0 0.0
    %474 = vmatprep.subr.mxu0 0.0
    %475 = vmatpush1.msra.mxu0 0.0
    %476 = vmatprep.subr.mxu0 0.0
    %477 = vmatpush1.msra.mxu0 0.0
    %478 = vmatprep.subr.mxu0 0.0
    %479 = vmatpush1.msra.mxu0 0.0
    %480 = vmatprep.subr.mxu0 0.0
    %481 = vmatpush1.msra.mxu0 0.0
    %482 = vmatprep.subr.mxu0 0.0
    %483 = vmatpush1.msra.mxu0 0.0
    %484 = vmatprep.subr.mxu0 0.0
    %485 = vmatpush1.msra.mxu0 0.0
    %486 = vmatprep.subr.mxu0 0.0
    %487 = vmatpush1.msra.mxu0 0.0
    %488 = vmatprep.subr.mxu0 0.0
    %489 = vmatpush1.msra.mxu0 0.0
    %490 = vmatprep.subr.mxu0 0.0
    %491 = vmatpush1.msra.mxu0 0.0
    %492 = vmatprep.subr.mxu0 0.0
    %493 = vmatpush1.msra.mxu0 0.0
    %494 = vmatprep.subr.mxu0 0.0
    %495 = vmatpush1.msra.mxu0 0.0
    %496 = vmatprep.subr.mxu0 0.0
    %497 = vmatpush1.msra.mxu0 0.0
    %498 = vmatprep.subr.mxu0 0.0
    %499 = vmatpush1.msra.mxu0 0.0
    %500 = vmatprep.subr.mxu0 0.0
    %501 = vmatpush1.msra.mxu0 0.0
    %502 = vmatprep.subr.mxu0 0.0
    %503 = vmatpush1.msra.mxu0 0.0
    %504 = vmatprep.subr.mxu0 0.0
    %505 = vmatpush1.msra.mxu0 0.0
    %506 = vmatprep.mubr.f32.mxu0 0.0
    %v507 = vand.u32 %v52, 4294901760
    %508 = vmatmul.mubr.f32.gmra.mrb[0].mxu0 %v507
    %v509 = vpop.f32.mrb[0].mxu0
    %v510 = vadd.f32 %v437, %v509
    %v511 = vpop.f32.mrb[0].mxu0
    %512 = vdwg.mxu0
    %v513 = vmul.f32 %v510, 0.01
    %v514 = vmax.f32 %v510, %v513
    %s515 = scalar_lea.vmem [#allocation4], 128
    %v516 = vld [vmem:[%s515] sm:$0xff]
    %v517 = vld [vmem:[%s515 + $0x8] sm:$0xff]
    %v518 = vld [vmem:[%s515 + $0x10] sm:$0xff]
    %v519 = vld [vmem:[%s515 + $0x18] sm:$0xff]
    %v520 = vld [vmem:[%s515 + $0x20] sm:$0xff]
    %v521 = vld [vmem:[%s515 + $0x28] sm:$0xff]
    %v522 = vld [vmem:[%s515 + $0x30] sm:$0xff]
    %v523 = vld [vmem:[%s515 + $0x38] sm:$0xff]
    %v524 = vld [vmem:[%s515 + $0x40] sm:$0xff]
    %v525 = vld [vmem:[%s515 + $0x48] sm:$0xff]
    %v526 = vld [vmem:[%s515 + $0x50] sm:$0xff]
    %v527 = vld [vmem:[%s515 + $0x58] sm:$0xff]
    %v528 = vld [vmem:[%s515 + $0x60] sm:$0xff]
    %v529 = vld [vmem:[%s515 + $0x68] sm:$0xff]
    %v530 = vld [vmem:[%s515 + $0x70] sm:$0xff]
    %v531 = vld [vmem:[%s515 + $0x78] sm:$0xff]
    %s532 = scalar_lea.vmem %s2, 1
    %v533 = vld [vmem:[%s532] sm:$0x1]
    %v535 = vlaneseq
    %v536 = vshrl.u32 %v535, 7
    %v537 = vsub.s32 0, %v536
    %v538 = vrot.slane %v533, %v537
    %540 = vmatprep.subr.mxu0 0.0
    %v541 = vand.u32 %v516, 4294901760
    %542 = vmatpush1.msra.mxu0 %v541
    %543 = vmatprep.subr.mxu0 0.0
    %v544 = vand.u32 %v517, 4294901760
    %545 = vmatpush1.msra.mxu0 %v544
    %546 = vmatprep.subr.mxu0 0.0
    %v547 = vand.u32 %v518, 4294901760
    %548 = vmatpush1.msra.mxu0 %v547
    %549 = vmatprep.subr.mxu0 0.0
    %v550 = vand.u32 %v519, 4294901760
    %551 = vmatpush1.msra.mxu0 %v550
    %552 = vmatprep.subr.mxu0 0.0
    %v553 = vand.u32 %v520, 4294901760
    %554 = vmatpush1.msra.mxu0 %v553
    %555 = vmatprep.subr.mxu0 0.0
    %v556 = vand.u32 %v521, 4294901760
    %557 = vmatpush1.msra.mxu0 %v556
    %558 = vmatprep.subr.mxu0 0.0
    %v559 = vand.u32 %v522, 4294901760
    %560 = vmatpush1.msra.mxu0 %v559
    %561 = vmatprep.subr.mxu0 0.0
    %v562 = vand.u32 %v523, 4294901760
    %563 = vmatpush1.msra.mxu0 %v562
    %564 = vmatprep.subr.mxu0 0.0
    %v565 = vand.u32 %v524, 4294901760
    %566 = vmatpush1.msra.mxu0 %v565
    %567 = vmatprep.subr.mxu0 0.0
    %v568 = vand.u32 %v525, 4294901760
    %569 = vmatpush1.msra.mxu0 %v568
    %570 = vmatprep.subr.mxu0 0.0
    %v571 = vand.u32 %v526, 4294901760
    %572 = vmatpush1.msra.mxu0 %v571
    %573 = vmatprep.subr.mxu0 0.0
    %v574 = vand.u32 %v527, 4294901760
    %575 = vmatpush1.msra.mxu0 %v574
    %576 = vmatprep.subr.mxu0 0.0
    %v577 = vand.u32 %v528, 4294901760
    %578 = vmatpush1.msra.mxu0 %v577
    %579 = vmatprep.subr.mxu0 0.0
    %v580 = vand.u32 %v529, 4294901760
    %581 = vmatpush1.msra.mxu0 %v580
    %582 = vmatprep.subr.mxu0 0.0
    %v583 = vand.u32 %v530, 4294901760
    %584 = vmatpush1.msra.mxu0 %v583
    %585 = vmatprep.subr.mxu0 0.0
    %v586 = vand.u32 %v531, 4294901760
    %587 = vmatpush1.msra.mxu0 %v586
    %588 = vmatprep.subr.mxu0 0.0
    %589 = vmatpush1.msra.mxu0 0.0
    %590 = vmatprep.subr.mxu0 0.0
    %591 = vmatpush1.msra.mxu0 0.0
    %592 = vmatprep.subr.mxu0 0.0
    %593 = vmatpush1.msra.mxu0 0.0
    %594 = vmatprep.subr.mxu0 0.0
    %595 = vmatpush1.msra.mxu0 0.0
    %596 = vmatprep.subr.mxu0 0.0
    %597 = vmatpush1.msra.mxu0 0.0
    %598 = vmatprep.subr.mxu0 0.0
    %599 = vmatpush1.msra.mxu0 0.0
    %600 = vmatprep.subr.mxu0 0.0
    %601 = vmatpush1.msra.mxu0 0.0
    %602 = vmatprep.subr.mxu0 0.0
    %603 = vmatpush1.msra.mxu0 0.0
    %604 = vmatprep.subr.mxu0 0.0
    %605 = vmatpush1.msra.mxu0 0.0
    %606 = vmatprep.subr.mxu0 0.0
    %607 = vmatpush1.msra.mxu0 0.0
    %608 = vmatprep.subr.mxu0 0.0
    %609 = vmatpush1.msra.mxu0 0.0
    %610 = vmatprep.subr.mxu0 0.0
    %611 = vmatpush1.msra.mxu0 0.0
    %612 = vmatprep.subr.mxu0 0.0
    %613 = vmatpush1.msra.mxu0 0.0
    %614 = vmatprep.subr.mxu0 0.0
    %615 = vmatpush1.msra.mxu0 0.0
    %616 = vmatprep.subr.mxu0 0.0
    %617 = vmatpush1.msra.mxu0 0.0
    %618 = vmatprep.subr.mxu0 0.0
    %619 = vmatpush1.msra.mxu0 0.0
    %620 = vmatprep.mubr.f32.mxu0 0.0
    %v621 = vand.u32 %v514, 4294901760
    %v622 = vsub.f32 %v514, %v621
    %v623 = vand.u32 %v622, 4294901760
    %v624 = vsub.f32 %v622, %v623
    %v625 = vand.u32 %v624, 4294901760
    %626 = vmatmul.mubr.f32.gmra.mrb[0].mxu0 %v625
    %v627 = vpop.f32.mrb[0].mxu0
    %v628 = vadd.f32 %v538, %v627
    %v629 = vpop.f32.mrb[0].mxu0
    %630 = vdwg.mxu0
    %631 = vmatprep.subr.mxu0 0.0
    %v632 = vand.u32 %v516, 4294901760
    %v633 = vsub.f32 %v516, %v632
    %v634 = vand.u32 %v633, 4294901760
    %v635 = vsub.f32 %v633, %v634
    %v636 = vand.u32 %v635, 4294901760
    %637 = vmatpush1.msra.mxu0 %v636
    %638 = vmatprep.subr.mxu0 0.0
    %v639 = vand.u32 %v517, 4294901760
    %v640 = vsub.f32 %v517, %v639
    %v641 = vand.u32 %v640, 4294901760
    %v642 = vsub.f32 %v640, %v641
    %v643 = vand.u32 %v642, 4294901760
    %644 = vmatpush1.msra.mxu0 %v643
    %645 = vmatprep.subr.mxu0 0.0
    %v646 = vand.u32 %v518, 4294901760
    %v647 = vsub.f32 %v518, %v646
    %v648 = vand.u32 %v647, 4294901760
    %v649 = vsub.f32 %v647, %v648
    %v650 = vand.u32 %v649, 4294901760
    %651 = vmatpush1.msra.mxu0 %v650
    %652 = vmatprep.subr.mxu0 0.0
    %v653 = vand.u32 %v519, 4294901760
    %v654 = vsub.f32 %v519, %v653
    %v655 = vand.u32 %v654, 4294901760
    %v656 = vsub.f32 %v654, %v655
    %v657 = vand.u32 %v656, 4294901760
    %658 = vmatpush1.msra.mxu0 %v657
    %659 = vmatprep.subr.mxu0 0.0
    %v660 = vand.u32 %v520, 4294901760
    %v661 = vsub.f32 %v520, %v660
    %v662 = vand.u32 %v661, 4294901760
    %v663 = vsub.f32 %v661, %v662
    %v664 = vand.u32 %v663, 4294901760
    %665 = vmatpush1.msra.mxu0 %v664
    %666 = vmatprep.subr.mxu0 0.0
    %v667 = vand.u32 %v521, 4294901760
    %v668 = vsub.f32 %v521, %v667
    %v669 = vand.u32 %v668, 4294901760
    %v670 = vsub.f32 %v668, %v669
    %v671 = vand.u32 %v670, 4294901760
    %672 = vmatpush1.msra.mxu0 %v671
    %673 = vmatprep.subr.mxu0 0.0
    %v674 = vand.u32 %v522, 4294901760
    %v675 = vsub.f32 %v522, %v674
    %v676 = vand.u32 %v675, 4294901760
    %v677 = vsub.f32 %v675, %v676
    %v678 = vand.u32 %v677, 4294901760
    %679 = vmatpush1.msra.mxu0 %v678
    %680 = vmatprep.subr.mxu0 0.0
    %v681 = vand.u32 %v523, 4294901760
    %v682 = vsub.f32 %v523, %v681
    %v683 = vand.u32 %v682, 4294901760
    %v684 = vsub.f32 %v682, %v683
    %v685 = vand.u32 %v684, 4294901760
    %686 = vmatpush1.msra.mxu0 %v685
    %687 = vmatprep.subr.mxu0 0.0
    %v688 = vand.u32 %v524, 4294901760
    %v689 = vsub.f32 %v524, %v688
    %v690 = vand.u32 %v689, 4294901760
    %v691 = vsub.f32 %v689, %v690
    %v692 = vand.u32 %v691, 4294901760
    %693 = vmatpush1.msra.mxu0 %v692
    %694 = vmatprep.subr.mxu0 0.0
    %v695 = vand.u32 %v525, 4294901760
    %v696 = vsub.f32 %v525, %v695
    %v697 = vand.u32 %v696, 4294901760
    %v698 = vsub.f32 %v696, %v697
    %v699 = vand.u32 %v698, 4294901760
    %700 = vmatpush1.msra.mxu0 %v699
    %701 = vmatprep.subr.mxu0 0.0
    %v702 = vand.u32 %v526, 4294901760
    %v703 = vsub.f32 %v526, %v702
    %v704 = vand.u32 %v703, 4294901760
    %v705 = vsub.f32 %v703, %v704
    %v706 = vand.u32 %v705, 4294901760
    %707 = vmatpush1.msra.mxu0 %v706
    %708 = vmatprep.subr.mxu0 0.0
    %v709 = vand.u32 %v527, 4294901760
    %v710 = vsub.f32 %v527, %v709
    %v711 = vand.u32 %v710, 4294901760
    %v712 = vsub.f32 %v710, %v711
    %v713 = vand.u32 %v712, 4294901760
    %714 = vmatpush1.msra.mxu0 %v713
    %715 = vmatprep.subr.mxu0 0.0
    %v716 = vand.u32 %v528, 4294901760
    %v717 = vsub.f32 %v528, %v716
    %v718 = vand.u32 %v717, 4294901760
    %v719 = vsub.f32 %v717, %v718
    %v720 = vand.u32 %v719, 4294901760
    %721 = vmatpush1.msra.mxu0 %v720
    %722 = vmatprep.subr.mxu0 0.0
    %v723 = vand.u32 %v529, 4294901760
    %v724 = vsub.f32 %v529, %v723
    %v725 = vand.u32 %v724, 4294901760
    %v726 = vsub.f32 %v724, %v725
    %v727 = vand.u32 %v726, 4294901760
    %728 = vmatpush1.msra.mxu0 %v727
    %729 = vmatprep.subr.mxu0 0.0
    %v730 = vand.u32 %v530, 4294901760
    %v731 = vsub.f32 %v530, %v730
    %v732 = vand.u32 %v731, 4294901760
    %v733 = vsub.f32 %v731, %v732
    %v734 = vand.u32 %v733, 4294901760
    %735 = vmatpush1.msra.mxu0 %v734
    %736 = vmatprep.subr.mxu0 0.0
    %v737 = vand.u32 %v531, 4294901760
    %v738 = vsub.f32 %v531, %v737
    %v739 = vand.u32 %v738, 4294901760
    %v740 = vsub.f32 %v738, %v739
    %v741 = vand.u32 %v740, 4294901760
    %742 = vmatpush1.msra.mxu0 %v741
    %743 = vmatprep.subr.mxu0 0.0
    %744 = vmatpush1.msra.mxu0 0.0
    %745 = vmatprep.subr.mxu0 0.0
    %746 = vmatpush1.msra.mxu0 0.0
    %747 = vmatprep.subr.mxu0 0.0
    %748 = vmatpush1.msra.mxu0 0.0
    %749 = vmatprep.subr.mxu0 0.0
    %750 = vmatpush1.msra.mxu0 0.0
    %751 = vmatprep.subr.mxu0 0.0
    %752 = vmatpush1.msra.mxu0 0.0
    %753 = vmatprep.subr.mxu0 0.0
    %754 = vmatpush1.msra.mxu0 0.0
    %755 = vmatprep.subr.mxu0 0.0
    %756 = vmatpush1.msra.mxu0 0.0
    %757 = vmatprep.subr.mxu0 0.0
    %758 = vmatpush1.msra.mxu0 0.0
    %759 = vmatprep.subr.mxu0 0.0
    %760 = vmatpush1.msra.mxu0 0.0
    %761 = vmatprep.subr.mxu0 0.0
    %762 = vmatpush1.msra.mxu0 0.0
    %763 = vmatprep.subr.mxu0 0.0
    %764 = vmatpush1.msra.mxu0 0.0
    %765 = vmatprep.subr.mxu0 0.0
    %766 = vmatpush1.msra.mxu0 0.0
    %767 = vmatprep.subr.mxu0 0.0
    %768 = vmatpush1.msra.mxu0 0.0
    %769 = vmatprep.subr.mxu0 0.0
    %770 = vmatpush1.msra.mxu0 0.0
    %771 = vmatprep.subr.mxu0 0.0
    %772 = vmatpush1.msra.mxu0 0.0
    %773 = vmatprep.subr.mxu0 0.0
    %774 = vmatpush1.msra.mxu0 0.0
    %775 = vmatprep.mubr.f32.mxu0 0.0
    %v776 = vand.u32 %v514, 4294901760
    %777 = vmatmul.mubr.f32.gmra.mrb[0].mxu0 %v776
    %v778 = vpop.f32.mrb[0].mxu0
    %v779 = vadd.f32 %v628, %v778
    %v780 = vpop.f32.mrb[0].mxu0
    %781 = vdwg.mxu0
    %782 = vmatprep.subr.mxu0 0.0
    %v783 = vand.u32 %v516, 4294901760
    %v784 = vsub.f32 %v516, %v783
    %785 = vmatpush1.msra.mxu0 %v784
    %786 = vmatprep.subr.mxu0 0.0
    %v787 = vand.u32 %v517, 4294901760
    %v788 = vsub.f32 %v517, %v787
    %789 = vmatpush1.msra.mxu0 %v788
    %790 = vmatprep.subr.mxu0 0.0
    %v791 = vand.u32 %v518, 4294901760
    %v792 = vsub.f32 %v518, %v791
    %793 = vmatpush1.msra.mxu0 %v792
    %794 = vmatprep.subr.mxu0 0.0
    %v795 = vand.u32 %v519, 4294901760
    %v796 = vsub.f32 %v519, %v795
    %797 = vmatpush1.msra.mxu0 %v796
    %798 = vmatprep.subr.mxu0 0.0
    %v799 = vand.u32 %v520, 4294901760
    %v800 = vsub.f32 %v520, %v799
    %801 = vmatpush1.msra.mxu0 %v800
    %802 = vmatprep.subr.mxu0 0.0
    %v803 = vand.u32 %v521, 4294901760
    %v804 = vsub.f32 %v521, %v803
    %805 = vmatpush1.msra.mxu0 %v804
    %806 = vmatprep.subr.mxu0 0.0
    %v807 = vand.u32 %v522, 4294901760
    %v808 = vsub.f32 %v522, %v807
    %809 = vmatpush1.msra.mxu0 %v808
    %810 = vmatprep.subr.mxu0 0.0
    %v811 = vand.u32 %v523, 4294901760
    %v812 = vsub.f32 %v523, %v811
    %813 = vmatpush1.msra.mxu0 %v812
    %814 = vmatprep.subr.mxu0 0.0
    %v815 = vand.u32 %v524, 4294901760
    %v816 = vsub.f32 %v524, %v815
    %817 = vmatpush1.msra.mxu0 %v816
    %818 = vmatprep.subr.mxu0 0.0
    %v819 = vand.u32 %v525, 4294901760
    %v820 = vsub.f32 %v525, %v819
    %821 = vmatpush1.msra.mxu0 %v820
    %822 = vmatprep.subr.mxu0 0.0
    %v823 = vand.u32 %v526, 4294901760
    %v824 = vsub.f32 %v526, %v823
    %825 = vmatpush1.msra.mxu0 %v824
    %826 = vmatprep.subr.mxu0 0.0
    %v827 = vand.u32 %v527, 4294901760
    %v828 = vsub.f32 %v527, %v827
    %829 = vmatpush1.msra.mxu0 %v828
    %830 = vmatprep.subr.mxu0 0.0
    %v831 = vand.u32 %v528, 4294901760
    %v832 = vsub.f32 %v528, %v831
    %833 = vmatpush1.msra.mxu0 %v832
    %834 = vmatprep.subr.mxu0 0.0
    %v835 = vand.u32 %v529, 4294901760
    %v836 = vsub.f32 %v529, %v835
    %837 = vmatpush1.msra.mxu0 %v836
    %838 = vmatprep.subr.mxu0 0.0
    %v839 = vand.u32 %v530, 4294901760
    %v840 = vsub.f32 %v530, %v839
    %841 = vmatpush1.msra.mxu0 %v840
    %842 = vmatprep.subr.mxu0 0.0
    %v843 = vand.u32 %v531, 4294901760
    %v844 = vsub.f32 %v531, %v843
    %845 = vmatpush1.msra.mxu0 %v844
    %846 = vmatprep.subr.mxu0 0.0
    %847 = vmatpush1.msra.mxu0 0.0
    %848 = vmatprep.subr.mxu0 0.0
    %849 = vmatpush1.msra.mxu0 0.0
    %850 = vmatprep.subr.mxu0 0.0
    %851 = vmatpush1.msra.mxu0 0.0
    %852 = vmatprep.subr.mxu0 0.0
    %853 = vmatpush1.msra.mxu0 0.0
    %854 = vmatprep.subr.mxu0 0.0
    %855 = vmatpush1.msra.mxu0 0.0
    %856 = vmatprep.subr.mxu0 0.0
    %857 = vmatpush1.msra.mxu0 0.0
    %858 = vmatprep.subr.mxu0 0.0
    %859 = vmatpush1.msra.mxu0 0.0
    %860 = vmatprep.subr.mxu0 0.0
    %861 = vmatpush1.msra.mxu0 0.0
    %862 = vmatprep.subr.mxu0 0.0
    %863 = vmatpush1.msra.mxu0 0.0
    %864 = vmatprep.subr.mxu0 0.0
    %865 = vmatpush1.msra.mxu0 0.0
    %866 = vmatprep.subr.mxu0 0.0
    %867 = vmatpush1.msra.mxu0 0.0
    %868 = vmatprep.subr.mxu0 0.0
    %869 = vmatpush1.msra.mxu0 0.0
    %870 = vmatprep.subr.mxu0 0.0
    %871 = vmatpush1.msra.mxu0 0.0
    %872 = vmatprep.subr.mxu0 0.0
    %873 = vmatpush1.msra.mxu0 0.0
    %874 = vmatprep.subr.mxu0 0.0
    %875 = vmatpush1.msra.mxu0 0.0
    %876 = vmatprep.subr.mxu0 0.0
    %877 = vmatpush1.msra.mxu0 0.0
    %878 = vmatprep.mubr.f32.mxu0 0.0
    %v879 = vand.u32 %v514, 4294901760
    %v880 = vsub.f32 %v514, %v879
    %881 = vmatmul.mubr.f32.gmra.mrb[0].mxu0 %v880
    %v882 = vpop.f32.mrb[0].mxu0
    %v883 = vadd.f32 %v779, %v882
    %v884 = vpop.f32.mrb[0].mxu0
    %885 = vdwg.mxu0
    %886 = vmatprep.subr.mxu0 0.0
    %v887 = vand.u32 %v516, 4294901760
    %888 = vmatpush1.msra.mxu0 %v887
    %889 = vmatprep.subr.mxu0 0.0
    %v890 = vand.u32 %v517, 4294901760
    %891 = vmatpush1.msra.mxu0 %v890
    %892 = vmatprep.subr.mxu0 0.0
    %v893 = vand.u32 %v518, 4294901760
    %894 = vmatpush1.msra.mxu0 %v893
    %895 = vmatprep.subr.mxu0 0.0
    %v896 = vand.u32 %v519, 4294901760
    %897 = vmatpush1.msra.mxu0 %v896
    %898 = vmatprep.subr.mxu0 0.0
    %v899 = vand.u32 %v520, 4294901760
    %900 = vmatpush1.msra.mxu0 %v899
    %901 = vmatprep.subr.mxu0 0.0
    %v902 = vand.u32 %v521, 4294901760
    %903 = vmatpush1.msra.mxu0 %v902
    %904 = vmatprep.subr.mxu0 0.0
    %v905 = vand.u32 %v522, 4294901760
    %906 = vmatpush1.msra.mxu0 %v905
    %907 = vmatprep.subr.mxu0 0.0
    %v908 = vand.u32 %v523, 4294901760
    %909 = vmatpush1.msra.mxu0 %v908
    %910 = vmatprep.subr.mxu0 0.0
    %v911 = vand.u32 %v524, 4294901760
    %912 = vmatpush1.msra.mxu0 %v911
    %913 = vmatprep.subr.mxu0 0.0
    %v914 = vand.u32 %v525, 4294901760
    %915 = vmatpush1.msra.mxu0 %v914
    %916 = vmatprep.subr.mxu0 0.0
    %v917 = vand.u32 %v526, 4294901760
    %918 = vmatpush1.msra.mxu0 %v917
    %919 = vmatprep.subr.mxu0 0.0
    %v920 = vand.u32 %v527, 4294901760
    %921 = vmatpush1.msra.mxu0 %v920
    %922 = vmatprep.subr.mxu0 0.0
    %v923 = vand.u32 %v528, 4294901760
    %924 = vmatpush1.msra.mxu0 %v923
    %925 = vmatprep.subr.mxu0 0.0
    %v926 = vand.u32 %v529, 4294901760
    %927 = vmatpush1.msra.mxu0 %v926
    %928 = vmatprep.subr.mxu0 0.0
    %v929 = vand.u32 %v530, 4294901760
    %930 = vmatpush1.msra.mxu0 %v929
    %931 = vmatprep.subr.mxu0 0.0
    %v932 = vand.u32 %v531, 4294901760
    %933 = vmatpush1.msra.mxu0 %v932
    %934 = vmatprep.subr.mxu0 0.0
    %935 = vmatpush1.msra.mxu0 0.0
    %936 = vmatprep.subr.mxu0 0.0
    %937 = vmatpush1.msra.mxu0 0.0
    %938 = vmatprep.subr.mxu0 0.0
    %939 = vmatpush1.msra.mxu0 0.0
    %940 = vmatprep.subr.mxu0 0.0
    %941 = vmatpush1.msra.mxu0 0.0
    %942 = vmatprep.subr.mxu0 0.0
    %943 = vmatpush1.msra.mxu0 0.0
    %944 = vmatprep.subr.mxu0 0.0
    %945 = vmatpush1.msra.mxu0 0.0
    %946 = vmatprep.subr.mxu0 0.0
    %947 = vmatpush1.msra.mxu0 0.0
    %948 = vmatprep.subr.mxu0 0.0
    %949 = vmatpush1.msra.mxu0 0.0
    %950 = vmatprep.subr.mxu0 0.0
    %951 = vmatpush1.msra.mxu0 0.0
    %952 = vmatprep.subr.mxu0 0.0
    %953 = vmatpush1.msra.mxu0 0.0
    %954 = vmatprep.subr.mxu0 0.0
    %955 = vmatpush1.msra.mxu0 0.0
    %956 = vmatprep.subr.mxu0 0.0
    %957 = vmatpush1.msra.mxu0 0.0
    %958 = vmatprep.subr.mxu0 0.0
    %959 = vmatpush1.msra.mxu0 0.0
    %960 = vmatprep.subr.mxu0 0.0
    %961 = vmatpush1.msra.mxu0 0.0
    %962 = vmatprep.subr.mxu0 0.0
    %963 = vmatpush1.msra.mxu0 0.0
    %964 = vmatprep.subr.mxu0 0.0
    %965 = vmatpush1.msra.mxu0 0.0
    %966 = vmatprep.mubr.f32.mxu0 0.0
    %v967 = vand.u32 %v514, 4294901760
    %v968 = vsub.f32 %v514, %v967
    %v969 = vand.u32 %v968, 4294901760
    %970 = vmatmul.mubr.f32.gmra.mrb[0].mxu0 %v969
    %v971 = vpop.f32.mrb[0].mxu0
    %v972 = vadd.f32 %v883, %v971
    %v973 = vpop.f32.mrb[0].mxu0
    %974 = vdwg.mxu0
    %975 = vmatprep.subr.mxu0 0.0
    %v976 = vand.u32 %v516, 4294901760
    %v977 = vsub.f32 %v516, %v976
    %v978 = vand.u32 %v977, 4294901760
    %979 = vmatpush1.msra.mxu0 %v978
    %980 = vmatprep.subr.mxu0 0.0
    %v981 = vand.u32 %v517, 4294901760
    %v982 = vsub.f32 %v517, %v981
    %v983 = vand.u32 %v982, 4294901760
    %984 = vmatpush1.msra.mxu0 %v983
    %985 = vmatprep.subr.mxu0 0.0
    %v986 = vand.u32 %v518, 4294901760
    %v987 = vsub.f32 %v518, %v986
    %v988 = vand.u32 %v987, 4294901760
    %989 = vmatpush1.msra.mxu0 %v988
    %990 = vmatprep.subr.mxu0 0.0
    %v991 = vand.u32 %v519, 4294901760
    %v992 = vsub.f32 %v519, %v991
    %v993 = vand.u32 %v992, 4294901760
    %994 = vmatpush1.msra.mxu0 %v993
    %995 = vmatprep.subr.mxu0 0.0
    %v996 = vand.u32 %v520, 4294901760
    %v997 = vsub.f32 %v520, %v996
    %v998 = vand.u32 %v997, 4294901760
    %999 = vmatpush1.msra.mxu0 %v998
    %1000 = vmatprep.subr.mxu0 0.0
    %v1001 = vand.u32 %v521, 4294901760
    %v1002 = vsub.f32 %v521, %v1001
    %v1003 = vand.u32 %v1002, 4294901760
    %1004 = vmatpush1.msra.mxu0 %v1003
    %1005 = vmatprep.subr.mxu0 0.0
    %v1006 = vand.u32 %v522, 4294901760
    %v1007 = vsub.f32 %v522, %v1006
    %v1008 = vand.u32 %v1007, 4294901760
    %1009 = vmatpush1.msra.mxu0 %v1008
    %1010 = vmatprep.subr.mxu0 0.0
    %v1011 = vand.u32 %v523, 4294901760
    %v1012 = vsub.f32 %v523, %v1011
    %v1013 = vand.u32 %v1012, 4294901760
    %1014 = vmatpush1.msra.mxu0 %v1013
    %1015 = vmatprep.subr.mxu0 0.0
    %v1016 = vand.u32 %v524, 4294901760
    %v1017 = vsub.f32 %v524, %v1016
    %v1018 = vand.u32 %v1017, 4294901760
    %1019 = vmatpush1.msra.mxu0 %v1018
    %1020 = vmatprep.subr.mxu0 0.0
    %v1021 = vand.u32 %v525, 4294901760
    %v1022 = vsub.f32 %v525, %v1021
    %v1023 = vand.u32 %v1022, 4294901760
    %1024 = vmatpush1.msra.mxu0 %v1023
    %1025 = vmatprep.subr.mxu0 0.0
    %v1026 = vand.u32 %v526, 4294901760
    %v1027 = vsub.f32 %v526, %v1026
    %v1028 = vand.u32 %v1027, 4294901760
    %1029 = vmatpush1.msra.mxu0 %v1028
    %1030 = vmatprep.subr.mxu0 0.0
    %v1031 = vand.u32 %v527, 4294901760
    %v1032 = vsub.f32 %v527, %v1031
    %v1033 = vand.u32 %v1032, 4294901760
    %1034 = vmatpush1.msra.mxu0 %v1033
    %1035 = vmatprep.subr.mxu0 0.0
    %v1036 = vand.u32 %v528, 4294901760
    %v1037 = vsub.f32 %v528, %v1036
    %v1038 = vand.u32 %v1037, 4294901760
    %1039 = vmatpush1.msra.mxu0 %v1038
    %1040 = vmatprep.subr.mxu0 0.0
    %v1041 = vand.u32 %v529, 4294901760
    %v1042 = vsub.f32 %v529, %v1041
    %v1043 = vand.u32 %v1042, 4294901760
    %1044 = vmatpush1.msra.mxu0 %v1043
    %1045 = vmatprep.subr.mxu0 0.0
    %v1046 = vand.u32 %v530, 4294901760
    %v1047 = vsub.f32 %v530, %v1046
    %v1048 = vand.u32 %v1047, 4294901760
    %1049 = vmatpush1.msra.mxu0 %v1048
    %1050 = vmatprep.subr.mxu0 0.0
    %v1051 = vand.u32 %v531, 4294901760
    %v1052 = vsub.f32 %v531, %v1051
    %v1053 = vand.u32 %v1052, 4294901760
    %1054 = vmatpush1.msra.mxu0 %v1053
    %1055 = vmatprep.subr.mxu0 0.0
    %1056 = vmatpush1.msra.mxu0 0.0
    %1057 = vmatprep.subr.mxu0 0.0
    %1058 = vmatpush1.msra.mxu0 0.0
    %1059 = vmatprep.subr.mxu0 0.0
    %1060 = vmatpush1.msra.mxu0 0.0
    %1061 = vmatprep.subr.mxu0 0.0
    %1062 = vmatpush1.msra.mxu0 0.0
    %1063 = vmatprep.subr.mxu0 0.0
    %1064 = vmatpush1.msra.mxu0 0.0
    %1065 = vmatprep.subr.mxu0 0.0
    %1066 = vmatpush1.msra.mxu0 0.0
    %1067 = vmatprep.subr.mxu0 0.0
    %1068 = vmatpush1.msra.mxu0 0.0
    %1069 = vmatprep.subr.mxu0 0.0
    %1070 = vmatpush1.msra.mxu0 0.0
    %1071 = vmatprep.subr.mxu0 0.0
    %1072 = vmatpush1.msra.mxu0 0.0
    %1073 = vmatprep.subr.mxu0 0.0
    %1074 = vmatpush1.msra.mxu0 0.0
    %1075 = vmatprep.subr.mxu0 0.0
    %1076 = vmatpush1.msra.mxu0 0.0
    %1077 = vmatprep.subr.mxu0 0.0
    %1078 = vmatpush1.msra.mxu0 0.0
    %1079 = vmatprep.subr.mxu0 0.0
    %1080 = vmatpush1.msra.mxu0 0.0
    %1081 = vmatprep.subr.mxu0 0.0
    %1082 = vmatpush1.msra.mxu0 0.0
    %1083 = vmatprep.subr.mxu0 0.0
    %1084 = vmatpush1.msra.mxu0 0.0
    %1085 = vmatprep.subr.mxu0 0.0
    %1086 = vmatpush1.msra.mxu0 0.0
    %1087 = vmatprep.mubr.f32.mxu0 0.0
    %v1088 = vand.u32 %v514, 4294901760
    %1089 = vmatmul.mubr.f32.gmra.mrb[0].mxu0 %v1088
    %v1090 = vpop.f32.mrb[0].mxu0
    %v1091 = vadd.f32 %v972, %v1090
    %v1092 = vpop.f32.mrb[0].mxu0
    %1093 = vdwg.mxu0
    %1094 = vmatprep.subr.mxu0 0.0
    %v1095 = vand.u32 %v516, 4294901760
    %1096 = vmatpush1.msra.mxu0 %v1095
    %1097 = vmatprep.subr.mxu0 0.0
    %v1098 = vand.u32 %v517, 4294901760
    %1099 = vmatpush1.msra.mxu0 %v1098
    %1100 = vmatprep.subr.mxu0 0.0
    %v1101 = vand.u32 %v518, 4294901760
    %1102 = vmatpush1.msra.mxu0 %v1101
    %1103 = vmatprep.subr.mxu0 0.0
    %v1104 = vand.u32 %v519, 4294901760
    %1105 = vmatpush1.msra.mxu0 %v1104
    %1106 = vmatprep.subr.mxu0 0.0
    %v1107 = vand.u32 %v520, 4294901760
    %1108 = vmatpush1.msra.mxu0 %v1107
    %1109 = vmatprep.subr.mxu0 0.0
    %v1110 = vand.u32 %v521, 4294901760
    %1111 = vmatpush1.msra.mxu0 %v1110
    %1112 = vmatprep.subr.mxu0 0.0
    %v1113 = vand.u32 %v522, 4294901760
    %1114 = vmatpush1.msra.mxu0 %v1113
    %1115 = vmatprep.subr.mxu0 0.0
    %v1116 = vand.u32 %v523, 4294901760
    %1117 = vmatpush1.msra.mxu0 %v1116
    %1118 = vmatprep.subr.mxu0 0.0
    %v1119 = vand.u32 %v524, 4294901760
    %1120 = vmatpush1.msra.mxu0 %v1119
    %1121 = vmatprep.subr.mxu0 0.0
    %v1122 = vand.u32 %v525, 4294901760
    %1123 = vmatpush1.msra.mxu0 %v1122
    %1124 = vmatprep.subr.mxu0 0.0
    %v1125 = vand.u32 %v526, 4294901760
    %1126 = vmatpush1.msra.mxu0 %v1125
    %1127 = vmatprep.subr.mxu0 0.0
    %v1128 = vand.u32 %v527, 4294901760
    %1129 = vmatpush1.msra.mxu0 %v1128
    %1130 = vmatprep.subr.mxu0 0.0
    %v1131 = vand.u32 %v528, 4294901760
    %1132 = vmatpush1.msra.mxu0 %v1131
    %1133 = vmatprep.subr.mxu0 0.0
    %v1134 = vand.u32 %v529, 4294901760
    %1135 = vmatpush1.msra.mxu0 %v1134
    %1136 = vmatprep.subr.mxu0 0.0
    %v1137 = vand.u32 %v530, 4294901760
    %1138 = vmatpush1.msra.mxu0 %v1137
    %1139 = vmatprep.subr.mxu0 0.0
    %v1140 = vand.u32 %v531, 4294901760
    %1141 = vmatpush1.msra.mxu0 %v1140
    %1142 = vmatprep.subr.mxu0 0.0
    %1143 = vmatpush1.msra.mxu0 0.0
    %1144 = vmatprep.subr.mxu0 0.0
    %1145 = vmatpush1.msra.mxu0 0.0
    %1146 = vmatprep.subr.mxu0 0.0
    %1147 = vmatpush1.msra.mxu0 0.0
    %1148 = vmatprep.subr.mxu0 0.0
    %1149 = vmatpush1.msra.mxu0 0.0
    %1150 = vmatprep.subr.mxu0 0.0
    %1151 = vmatpush1.msra.mxu0 0.0
    %1152 = vmatprep.subr.mxu0 0.0
    %1153 = vmatpush1.msra.mxu0 0.0
    %1154 = vmatprep.subr.mxu0 0.0
    %1155 = vmatpush1.msra.mxu0 0.0
    %1156 = vmatprep.subr.mxu0 0.0
    %1157 = vmatpush1.msra.mxu0 0.0
    %1158 = vmatprep.subr.mxu0 0.0
    %1159 = vmatpush1.msra.mxu0 0.0
    %1160 = vmatprep.subr.mxu0 0.0
    %1161 = vmatpush1.msra.mxu0 0.0
    %1162 = vmatprep.subr.mxu0 0.0
    %1163 = vmatpush1.msra.mxu0 0.0
    %1164 = vmatprep.subr.mxu0 0.0
    %1165 = vmatpush1.msra.mxu0 0.0
    %1166 = vmatprep.subr.mxu0 0.0
    %1167 = vmatpush1.msra.mxu0 0.0
    %1168 = vmatprep.subr.mxu0 0.0
    %1169 = vmatpush1.msra.mxu0 0.0
    %1170 = vmatprep.subr.mxu0 0.0
    %1171 = vmatpush1.msra.mxu0 0.0
    %1172 = vmatprep.subr.mxu0 0.0
    %1173 = vmatpush1.msra.mxu0 0.0
    %1174 = vmatprep.mubr.f32.mxu0 0.0
    %v1175 = vand.u32 %v514, 4294901760
    %1176 = vmatmul.mubr.f32.gmra.mrb[0].mxu0 %v1175
    %v1177 = vpop.f32.mrb[0].mxu0
    %v1178 = vadd.f32 %v1091, %v1177
    %v1179 = vpop.f32.mrb[0].mxu0
    %1180 = vdwg.mxu0
    %v1181 = vmul.f32 %v1178, 0.01
    %v1182 = vmax.f32 %v1178, %v1181
    %s1183 = scalar_lea.vmem [#allocation4], 256
    %v1184 = vld [vmem:[%s1183] sm:$0xff]
    %v1185 = vld [vmem:[%s1183 + $0x8] sm:$0xff]
    %v1186 = vld [vmem:[%s1183 + $0x10] sm:$0xff]
    %v1187 = vld [vmem:[%s1183 + $0x18] sm:$0xff]
    %v1188 = vld [vmem:[%s1183 + $0x20] sm:$0xff]
    %v1189 = vld [vmem:[%s1183 + $0x28] sm:$0xff]
    %v1190 = vld [vmem:[%s1183 + $0x30] sm:$0xff]
    %v1191 = vld [vmem:[%s1183 + $0x38] sm:$0xff]
    %v1192 = vld [vmem:[%s1183 + $0x40] sm:$0xff]
    %v1193 = vld [vmem:[%s1183 + $0x48] sm:$0xff]
    %v1194 = vld [vmem:[%s1183 + $0x50] sm:$0xff]
    %v1195 = vld [vmem:[%s1183 + $0x58] sm:$0xff]
    %v1196 = vld [vmem:[%s1183 + $0x60] sm:$0xff]
    %v1197 = vld [vmem:[%s1183 + $0x68] sm:$0xff]
    %v1198 = vld [vmem:[%s1183 + $0x70] sm:$0xff]
    %v1199 = vld [vmem:[%s1183 + $0x78] sm:$0xff]
    %s1200 = scalar_lea.vmem %s2, 2
    %v1201 = vld [vmem:[%s1200] sm:$0x1]
    %v1203 = vlaneseq
    %v1204 = vshrl.u32 %v1203, 7
    %v1205 = vsub.s32 0, %v1204
    %v1206 = vrot.slane %v1201, %v1205
    %1208 = vmatprep.subr.mxu0 0.0
    %v1209 = vand.u32 %v1184, 4294901760
    %1210 = vmatpush1.msra.mxu0 %v1209
    %1211 = vmatprep.subr.mxu0 0.0
    %v1212 = vand.u32 %v1185, 4294901760
    %1213 = vmatpush1.msra.mxu0 %v1212
    %1214 = vmatprep.subr.mxu0 0.0
    %v1215 = vand.u32 %v1186, 4294901760
    %1216 = vmatpush1.msra.mxu0 %v1215
    %1217 = vmatprep.subr.mxu0 0.0
    %v1218 = vand.u32 %v1187, 4294901760
    %1219 = vmatpush1.msra.mxu0 %v1218
    %1220 = vmatprep.subr.mxu0 0.0
    %v1221 = vand.u32 %v1188, 4294901760
    %1222 = vmatpush1.msra.mxu0 %v1221
    %1223 = vmatprep.subr.mxu0 0.0
    %v1224 = vand.u32 %v1189, 4294901760
    %1225 = vmatpush1.msra.mxu0 %v1224
    %1226 = vmatprep.subr.mxu0 0.0
    %v1227 = vand.u32 %v1190, 4294901760
    %1228 = vmatpush1.msra.mxu0 %v1227
    %1229 = vmatprep.subr.mxu0 0.0
    %v1230 = vand.u32 %v1191, 4294901760
    %1231 = vmatpush1.msra.mxu0 %v1230
    %1232 = vmatprep.subr.mxu0 0.0
    %v1233 = vand.u32 %v1192, 4294901760
    %1234 = vmatpush1.msra.mxu0 %v1233
    %1235 = vmatprep.subr.mxu0 0.0
    %v1236 = vand.u32 %v1193, 4294901760
    %1237 = vmatpush1.msra.mxu0 %v1236
    %1238 = vmatprep.subr.mxu0 0.0
    %v1239 = vand.u32 %v1194, 4294901760
    %1240 = vmatpush1.msra.mxu0 %v1239
    %1241 = vmatprep.subr.mxu0 0.0
    %v1242 = vand.u32 %v1195, 4294901760
    %1243 = vmatpush1.msra.mxu0 %v1242
    %1244 = vmatprep.subr.mxu0 0.0
    %v1245 = vand.u32 %v1196, 4294901760
    %1246 = vmatpush1.msra.mxu0 %v1245
    %1247 = vmatprep.subr.mxu0 0.0
    %v1248 = vand.u32 %v1197, 4294901760
    %1249 = vmatpush1.msra.mxu0 %v1248
    %1250 = vmatprep.subr.mxu0 0.0
    %v1251 = vand.u32 %v1198, 4294901760
    %1252 = vmatpush1.msra.mxu0 %v1251
    %1253 = vmatprep.subr.mxu0 0.0
    %v1254 = vand.u32 %v1199, 4294901760
    %1255 = vmatpush1.msra.mxu0 %v1254
    %1256 = vmatprep.subr.mxu0 0.0
    %1257 = vmatpush1.msra.mxu0 0.0
    %1258 = vmatprep.subr.mxu0 0.0
    %1259 = vmatpush1.msra.mxu0 0.0
    %1260 = vmatprep.subr.mxu0 0.0
    %1261 = vmatpush1.msra.mxu0 0.0
    %1262 = vmatprep.subr.mxu0 0.0
    %1263 = vmatpush1.msra.mxu0 0.0
    %1264 = vmatprep.subr.mxu0 0.0
    %1265 = vmatpush1.msra.mxu0 0.0
    %1266 = vmatprep.subr.mxu0 0.0
    %1267 = vmatpush1.msra.mxu0 0.0
    %1268 = vmatprep.subr.mxu0 0.0
    %1269 = vmatpush1.msra.mxu0 0.0
    %1270 = vmatprep.subr.mxu0 0.0
    %1271 = vmatpush1.msra.mxu0 0.0
    %1272 = vmatprep.subr.mxu0 0.0
    %1273 = vmatpush1.msra.mxu0 0.0
    %1274 = vmatprep.subr.mxu0 0.0
    %1275 = vmatpush1.msra.mxu0 0.0
    %1276 = vmatprep.subr.mxu0 0.0
    %1277 = vmatpush1.msra.mxu0 0.0
    %1278 = vmatprep.subr.mxu0 0.0
    %1279 = vmatpush1.msra.mxu0 0.0
    %1280 = vmatprep.subr.mxu0 0.0
    %1281 = vmatpush1.msra.mxu0 0.0
    %1282 = vmatprep.subr.mxu0 0.0
    %1283 = vmatpush1.msra.mxu0 0.0
    %1284 = vmatprep.subr.mxu0 0.0
    %1285 = vmatpush1.msra.mxu0 0.0
    %1286 = vmatprep.subr.mxu0 0.0
    %1287 = vmatpush1.msra.mxu0 0.0
    %1288 = vmatprep.mubr.f32.mxu0 0.0
    %v1289 = vand.u32 %v1182, 4294901760
    %v1290 = vsub.f32 %v1182, %v1289
    %v1291 = vand.u32 %v1290, 4294901760
    %v1292 = vsub.f32 %v1290, %v1291
    %v1293 = vand.u32 %v1292, 4294901760
    %1294 = vmatmul.mubr.f32.gmra.mrb[0].mxu0 %v1293
    %v1295 = vpop.f32.mrb[0].mxu0
    %v1296 = vadd.f32 %v1206, %v1295
    %v1297 = vpop.f32.mrb[0].mxu0
    %1298 = vdwg.mxu0
    %1299 = vmatprep.subr.mxu0 0.0
    %v1300 = vand.u32 %v1184, 4294901760
    %v1301 = vsub.f32 %v1184, %v1300
    %v1302 = vand.u32 %v1301, 4294901760
    %v1303 = vsub.f32 %v1301, %v1302
    %v1304 = vand.u32 %v1303, 4294901760
    %1305 = vmatpush1.msra.mxu0 %v1304
    %1306 = vmatprep.subr.mxu0 0.0
    %v1307 = vand.u32 %v1185, 4294901760
    %v1308 = vsub.f32 %v1185, %v1307
    %v1309 = vand.u32 %v1308, 4294901760
    %v1310 = vsub.f32 %v1308, %v1309
    %v1311 = vand.u32 %v1310, 4294901760
    %1312 = vmatpush1.msra.mxu0 %v1311
    %1313 = vmatprep.subr.mxu0 0.0
    %v1314 = vand.u32 %v1186, 4294901760
    %v1315 = vsub.f32 %v1186, %v1314
    %v1316 = vand.u32 %v1315, 4294901760
    %v1317 = vsub.f32 %v1315, %v1316
    %v1318 = vand.u32 %v1317, 4294901760
    %1319 = vmatpush1.msra.mxu0 %v1318
    %1320 = vmatprep.subr.mxu0 0.0
    %v1321 = vand.u32 %v1187, 4294901760
    %v1322 = vsub.f32 %v1187, %v1321
    %v1323 = vand.u32 %v1322, 4294901760
    %v1324 = vsub.f32 %v1322, %v1323
    %v1325 = vand.u32 %v1324, 4294901760
    %1326 = vmatpush1.msra.mxu0 %v1325
    %1327 = vmatprep.subr.mxu0 0.0
    %v1328 = vand.u32 %v1188, 4294901760
    %v1329 = vsub.f32 %v1188, %v1328
    %v1330 = vand.u32 %v1329, 4294901760
    %v1331 = vsub.f32 %v1329, %v1330
    %v1332 = vand.u32 %v1331, 4294901760
    %1333 = vmatpush1.msra.mxu0 %v1332
    %1334 = vmatprep.subr.mxu0 0.0
    %v1335 = vand.u32 %v1189, 4294901760
    %v1336 = vsub.f32 %v1189, %v1335
    %v1337 = vand.u32 %v1336, 4294901760
    %v1338 = vsub.f32 %v1336, %v1337
    %v1339 = vand.u32 %v1338, 4294901760
    %1340 = vmatpush1.msra.mxu0 %v1339
    %1341 = vmatprep.subr.mxu0 0.0
    %v1342 = vand.u32 %v1190, 4294901760
    %v1343 = vsub.f32 %v1190, %v1342
    %v1344 = vand.u32 %v1343, 4294901760
    %v1345 = vsub.f32 %v1343, %v1344
    %v1346 = vand.u32 %v1345, 4294901760
    %1347 = vmatpush1.msra.mxu0 %v1346
    %1348 = vmatprep.subr.mxu0 0.0
    %v1349 = vand.u32 %v1191, 4294901760
    %v1350 = vsub.f32 %v1191, %v1349
    %v1351 = vand.u32 %v1350, 4294901760
    %v1352 = vsub.f32 %v1350, %v1351
    %v1353 = vand.u32 %v1352, 4294901760
    %1354 = vmatpush1.msra.mxu0 %v1353
    %1355 = vmatprep.subr.mxu0 0.0
    %v1356 = vand.u32 %v1192, 4294901760
    %v1357 = vsub.f32 %v1192, %v1356
    %v1358 = vand.u32 %v1357, 4294901760
    %v1359 = vsub.f32 %v1357, %v1358
    %v1360 = vand.u32 %v1359, 4294901760
    %1361 = vmatpush1.msra.mxu0 %v1360
    %1362 = vmatprep.subr.mxu0 0.0
    %v1363 = vand.u32 %v1193, 4294901760
    %v1364 = vsub.f32 %v1193, %v1363
    %v1365 = vand.u32 %v1364, 4294901760
    %v1366 = vsub.f32 %v1364, %v1365
    %v1367 = vand.u32 %v1366, 4294901760
    %1368 = vmatpush1.msra.mxu0 %v1367
    %1369 = vmatprep.subr.mxu0 0.0
    %v1370 = vand.u32 %v1194, 4294901760
    %v1371 = vsub.f32 %v1194, %v1370
    %v1372 = vand.u32 %v1371, 4294901760
    %v1373 = vsub.f32 %v1371, %v1372
    %v1374 = vand.u32 %v1373, 4294901760
    %1375 = vmatpush1.msra.mxu0 %v1374
    %1376 = vmatprep.subr.mxu0 0.0
    %v1377 = vand.u32 %v1195, 4294901760
    %v1378 = vsub.f32 %v1195, %v1377
    %v1379 = vand.u32 %v1378, 4294901760
    %v1380 = vsub.f32 %v1378, %v1379
    %v1381 = vand.u32 %v1380, 4294901760
    %1382 = vmatpush1.msra.mxu0 %v1381
    %1383 = vmatprep.subr.mxu0 0.0
    %v1384 = vand.u32 %v1196, 4294901760
    %v1385 = vsub.f32 %v1196, %v1384
    %v1386 = vand.u32 %v1385, 4294901760
    %v1387 = vsub.f32 %v1385, %v1386
    %v1388 = vand.u32 %v1387, 4294901760
    %1389 = vmatpush1.msra.mxu0 %v1388
    %1390 = vmatprep.subr.mxu0 0.0
    %v1391 = vand.u32 %v1197, 4294901760
    %v1392 = vsub.f32 %v1197, %v1391
    %v1393 = vand.u32 %v1392, 4294901760
    %v1394 = vsub.f32 %v1392, %v1393
    %v1395 = vand.u32 %v1394, 4294901760
    %1396 = vmatpush1.msra.mxu0 %v1395
    %1397 = vmatprep.subr.mxu0 0.0
    %v1398 = vand.u32 %v1198, 4294901760
    %v1399 = vsub.f32 %v1198, %v1398
    %v1400 = vand.u32 %v1399, 4294901760
    %v1401 = vsub.f32 %v1399, %v1400
    %v1402 = vand.u32 %v1401, 4294901760
    %1403 = vmatpush1.msra.mxu0 %v1402
    %1404 = vmatprep.subr.mxu0 0.0
    %v1405 = vand.u32 %v1199, 4294901760
    %v1406 = vsub.f32 %v1199, %v1405
    %v1407 = vand.u32 %v1406, 4294901760
    %v1408 = vsub.f32 %v1406, %v1407
    %v1409 = vand.u32 %v1408, 4294901760
    %1410 = vmatpush1.msra.mxu0 %v1409
    %1411 = vmatprep.subr.mxu0 0.0
    %1412 = vmatpush1.msra.mxu0 0.0
    %1413 = vmatprep.subr.mxu0 0.0
    %1414 = vmatpush1.msra.mxu0 0.0
    %1415 = vmatprep.subr.mxu0 0.0
    %1416 = vmatpush1.msra.mxu0 0.0
    %1417 = vmatprep.subr.mxu0 0.0
    %1418 = vmatpush1.msra.mxu0 0.0
    %1419 = vmatprep.subr.mxu0 0.0
    %1420 = vmatpush1.msra.mxu0 0.0
    %1421 = vmatprep.subr.mxu0 0.0
    %1422 = vmatpush1.msra.mxu0 0.0
    %1423 = vmatprep.subr.mxu0 0.0
    %1424 = vmatpush1.msra.mxu0 0.0
    %1425 = vmatprep.subr.mxu0 0.0
    %1426 = vmatpush1.msra.mxu0 0.0
    %1427 = vmatprep.subr.mxu0 0.0
    %1428 = vmatpush1.msra.mxu0 0.0
    %1429 = vmatprep.subr.mxu0 0.0
    %1430 = vmatpush1.msra.mxu0 0.0
    %1431 = vmatprep.subr.mxu0 0.0
    %1432 = vmatpush1.msra.mxu0 0.0
    %1433 = vmatprep.subr.mxu0 0.0
    %1434 = vmatpush1.msra.mxu0 0.0
    %1435 = vmatprep.subr.mxu0 0.0
    %1436 = vmatpush1.msra.mxu0 0.0
    %1437 = vmatprep.subr.mxu0 0.0
    %1438 = vmatpush1.msra.mxu0 0.0
    %1439 = vmatprep.subr.mxu0 0.0
    %1440 = vmatpush1.msra.mxu0 0.0
    %1441 = vmatprep.subr.mxu0 0.0
    %1442 = vmatpush1.msra.mxu0 0.0
    %1443 = vmatprep.mubr.f32.mxu0 0.0
    %v1444 = vand.u32 %v1182, 4294901760
    %1445 = vmatmul.mubr.f32.gmra.mrb[0].mxu0 %v1444
    %v1446 = vpop.f32.mrb[0].mxu0
    %v1447 = vadd.f32 %v1296, %v1446
    %v1448 = vpop.f32.mrb[0].mxu0
    %1449 = vdwg.mxu0
    %1450 = vmatprep.subr.mxu0 0.0
    %v1451 = vand.u32 %v1184, 4294901760
    %v1452 = vsub.f32 %v1184, %v1451
    %1453 = vmatpush1.msra.mxu0 %v1452
    %1454 = vmatprep.subr.mxu0 0.0
    %v1455 = vand.u32 %v1185, 4294901760
    %v1456 = vsub.f32 %v1185, %v1455
    %1457 = vmatpush1.msra.mxu0 %v1456
    %1458 = vmatprep.subr.mxu0 0.0
    %v1459 = vand.u32 %v1186, 4294901760
    %v1460 = vsub.f32 %v1186, %v1459
    %1461 = vmatpush1.msra.mxu0 %v1460
    %1462 = vmatprep.subr.mxu0 0.0
    %v1463 = vand.u32 %v1187, 4294901760
    %v1464 = vsub.f32 %v1187, %v1463
    %1465 = vmatpush1.msra.mxu0 %v1464
    %1466 = vmatprep.subr.mxu0 0.0
    %v1467 = vand.u32 %v1188, 4294901760
    %v1468 = vsub.f32 %v1188, %v1467
    %1469 = vmatpush1.msra.mxu0 %v1468
    %1470 = vmatprep.subr.mxu0 0.0
    %v1471 = vand.u32 %v1189, 4294901760
    %v1472 = vsub.f32 %v1189, %v1471
    %1473 = vmatpush1.msra.mxu0 %v1472
    %1474 = vmatprep.subr.mxu0 0.0
    %v1475 = vand.u32 %v1190, 4294901760
    %v1476 = vsub.f32 %v1190, %v1475
    %1477 = vmatpush1.msra.mxu0 %v1476
    %1478 = vmatprep.subr.mxu0 0.0
    %v1479 = vand.u32 %v1191, 4294901760
    %v1480 = vsub.f32 %v1191, %v1479
    %1481 = vmatpush1.msra.mxu0 %v1480
    %1482 = vmatprep.subr.mxu0 0.0
    %v1483 = vand.u32 %v1192, 4294901760
    %v1484 = vsub.f32 %v1192, %v1483
    %1485 = vmatpush1.msra.mxu0 %v1484
    %1486 = vmatprep.subr.mxu0 0.0
    %v1487 = vand.u32 %v1193, 4294901760
    %v1488 = vsub.f32 %v1193, %v1487
    %1489 = vmatpush1.msra.mxu0 %v1488
    %1490 = vmatprep.subr.mxu0 0.0
    %v1491 = vand.u32 %v1194, 4294901760
    %v1492 = vsub.f32 %v1194, %v1491
    %1493 = vmatpush1.msra.mxu0 %v1492
    %1494 = vmatprep.subr.mxu0 0.0
    %v1495 = vand.u32 %v1195, 4294901760
    %v1496 = vsub.f32 %v1195, %v1495
    %1497 = vmatpush1.msra.mxu0 %v1496
    %1498 = vmatprep.subr.mxu0 0.0
    %v1499 = vand.u32 %v1196, 4294901760
    %v1500 = vsub.f32 %v1196, %v1499
    %1501 = vmatpush1.msra.mxu0 %v1500
    %1502 = vmatprep.subr.mxu0 0.0
    %v1503 = vand.u32 %v1197, 4294901760
    %v1504 = vsub.f32 %v1197, %v1503
    %1505 = vmatpush1.msra.mxu0 %v1504
    %1506 = vmatprep.subr.mxu0 0.0
    %v1507 = vand.u32 %v1198, 4294901760
    %v1508 = vsub.f32 %v1198, %v1507
    %1509 = vmatpush1.msra.mxu0 %v1508
    %1510 = vmatprep.subr.mxu0 0.0
    %v1511 = vand.u32 %v1199, 4294901760
    %v1512 = vsub.f32 %v1199, %v1511
    %1513 = vmatpush1.msra.mxu0 %v1512
    %1514 = vmatprep.subr.mxu0 0.0
    %1515 = vmatpush1.msra.mxu0 0.0
    %1516 = vmatprep.subr.mxu0 0.0
    %1517 = vmatpush1.msra.mxu0 0.0
    %1518 = vmatprep.subr.mxu0 0.0
    %1519 = vmatpush1.msra.mxu0 0.0
    %1520 = vmatprep.subr.mxu0 0.0
    %1521 = vmatpush1.msra.mxu0 0.0
    %1522 = vmatprep.subr.mxu0 0.0
    %1523 = vmatpush1.msra.mxu0 0.0
    %1524 = vmatprep.subr.mxu0 0.0
    %1525 = vmatpush1.msra.mxu0 0.0
    %1526 = vmatprep.subr.mxu0 0.0
    %1527 = vmatpush1.msra.mxu0 0.0
    %1528 = vmatprep.subr.mxu0 0.0
    %1529 = vmatpush1.msra.mxu0 0.0
    %1530 = vmatprep.subr.mxu0 0.0
    %1531 = vmatpush1.msra.mxu0 0.0
    %1532 = vmatprep.subr.mxu0 0.0
    %1533 = vmatpush1.msra.mxu0 0.0
    %1534 = vmatprep.subr.mxu0 0.0
    %1535 = vmatpush1.msra.mxu0 0.0
    %1536 = vmatprep.subr.mxu0 0.0
    %1537 = vmatpush1.msra.mxu0 0.0
    %1538 = vmatprep.subr.mxu0 0.0
    %1539 = vmatpush1.msra.mxu0 0.0
    %1540 = vmatprep.subr.mxu0 0.0
    %1541 = vmatpush1.msra.mxu0 0.0
    %1542 = vmatprep.subr.mxu0 0.0
    %1543 = vmatpush1.msra.mxu0 0.0
    %1544 = vmatprep.subr.mxu0 0.0
    %1545 = vmatpush1.msra.mxu0 0.0
    %1546 = vmatprep.mubr.f32.mxu0 0.0
    %v1547 = vand.u32 %v1182, 4294901760
    %v1548 = vsub.f32 %v1182, %v1547
    %1549 = vmatmul.mubr.f32.gmra.mrb[0].mxu0 %v1548
    %v1550 = vpop.f32.mrb[0].mxu0
    %v1551 = vadd.f32 %v1447, %v1550
    %v1552 = vpop.f32.mrb[0].mxu0
    %1553 = vdwg.mxu0
    %1554 = vmatprep.subr.mxu0 0.0
    %v1555 = vand.u32 %v1184, 4294901760
    %1556 = vmatpush1.msra.mxu0 %v1555
    %1557 = vmatprep.subr.mxu0 0.0
    %v1558 = vand.u32 %v1185, 4294901760
    %1559 = vmatpush1.msra.mxu0 %v1558
    %1560 = vmatprep.subr.mxu0 0.0
    %v1561 = vand.u32 %v1186, 4294901760
    %1562 = vmatpush1.msra.mxu0 %v1561
    %1563 = vmatprep.subr.mxu0 0.0
    %v1564 = vand.u32 %v1187, 4294901760
    %1565 = vmatpush1.msra.mxu0 %v1564
    %1566 = vmatprep.subr.mxu0 0.0
    %v1567 = vand.u32 %v1188, 4294901760
    %1568 = vmatpush1.msra.mxu0 %v1567
    %1569 = vmatprep.subr.mxu0 0.0
    %v1570 = vand.u32 %v1189, 4294901760
    %1571 = vmatpush1.msra.mxu0 %v1570
    %1572 = vmatprep.subr.mxu0 0.0
    %v1573 = vand.u32 %v1190, 4294901760
    %1574 = vmatpush1.msra.mxu0 %v1573
    %1575 = vmatprep.subr.mxu0 0.0
    %v1576 = vand.u32 %v1191, 4294901760
    %1577 = vmatpush1.msra.mxu0 %v1576
    %1578 = vmatprep.subr.mxu0 0.0
    %v1579 = vand.u32 %v1192, 4294901760
    %1580 = vmatpush1.msra.mxu0 %v1579
    %1581 = vmatprep.subr.mxu0 0.0
    %v1582 = vand.u32 %v1193, 4294901760
    %1583 = vmatpush1.msra.mxu0 %v1582
    %1584 = vmatprep.subr.mxu0 0.0
    %v1585 = vand.u32 %v1194, 4294901760
    %1586 = vmatpush1.msra.mxu0 %v1585
    %1587 = vmatprep.subr.mxu0 0.0
    %v1588 = vand.u32 %v1195, 4294901760
    %1589 = vmatpush1.msra.mxu0 %v1588
    %1590 = vmatprep.subr.mxu0 0.0
    %v1591 = vand.u32 %v1196, 4294901760
    %1592 = vmatpush1.msra.mxu0 %v1591
    %1593 = vmatprep.subr.mxu0 0.0
    %v1594 = vand.u32 %v1197, 4294901760
    %1595 = vmatpush1.msra.mxu0 %v1594
    %1596 = vmatprep.subr.mxu0 0.0
    %v1597 = vand.u32 %v1198, 4294901760
    %1598 = vmatpush1.msra.mxu0 %v1597
    %1599 = vmatprep.subr.mxu0 0.0
    %v1600 = vand.u32 %v1199, 4294901760
    %1601 = vmatpush1.msra.mxu0 %v1600
    %1602 = vmatprep.subr.mxu0 0.0
    %1603 = vmatpush1.msra.mxu0 0.0
    %1604 = vmatprep.subr.mxu0 0.0
    %1605 = vmatpush1.msra.mxu0 0.0
    %1606 = vmatprep.subr.mxu0 0.0
    %1607 = vmatpush1.msra.mxu0 0.0
    %1608 = vmatprep.subr.mxu0 0.0
    %1609 = vmatpush1.msra.mxu0 0.0
    %1610 = vmatprep.subr.mxu0 0.0
    %1611 = vmatpush1.msra.mxu0 0.0
    %1612 = vmatprep.subr.mxu0 0.0
    %1613 = vmatpush1.msra.mxu0 0.0
    %1614 = vmatprep.subr.mxu0 0.0
    %1615 = vmatpush1.msra.mxu0 0.0
    %1616 = vmatprep.subr.mxu0 0.0
    %1617 = vmatpush1.msra.mxu0 0.0
    %1618 = vmatprep.subr.mxu0 0.0
    %1619 = vmatpush1.msra.mxu0 0.0
    %1620 = vmatprep.subr.mxu0 0.0
    %1621 = vmatpush1.msra.mxu0 0.0
    %1622 = vmatprep.subr.mxu0 0.0
    %1623 = vmatpush1.msra.mxu0 0.0
    %1624 = vmatprep.subr.mxu0 0.0
    %1625 = vmatpush1.msra.mxu0 0.0
    %1626 = vmatprep.subr.mxu0 0.0
    %1627 = vmatpush1.msra.mxu0 0.0
    %1628 = vmatprep.subr.mxu0 0.0
    %1629 = vmatpush1.msra.mxu0 0.0
    %1630 = vmatprep.subr.mxu0 0.0
    %1631 = vmatpush1.msra.mxu0 0.0
    %1632 = vmatprep.subr.mxu0 0.0
    %1633 = vmatpush1.msra.mxu0 0.0
    %1634 = vmatprep.mubr.f32.mxu0 0.0
    %v1635 = vand.u32 %v1182, 4294901760
    %v1636 = vsub.f32 %v1182, %v1635
    %v1637 = vand.u32 %v1636, 4294901760
    %1638 = vmatmul.mubr.f32.gmra.mrb[0].mxu0 %v1637
    %v1639 = vpop.f32.mrb[0].mxu0
    %v1640 = vadd.f32 %v1551, %v1639
    %v1641 = vpop.f32.mrb[0].mxu0
    %1642 = vdwg.mxu0
    %1643 = vmatprep.subr.mxu0 0.0
    %v1644 = vand.u32 %v1184, 4294901760
    %v1645 = vsub.f32 %v1184, %v1644
    %v1646 = vand.u32 %v1645, 4294901760
    %1647 = vmatpush1.msra.mxu0 %v1646
    %1648 = vmatprep.subr.mxu0 0.0
    %v1649 = vand.u32 %v1185, 4294901760
    %v1650 = vsub.f32 %v1185, %v1649
    %v1651 = vand.u32 %v1650, 4294901760
    %1652 = vmatpush1.msra.mxu0 %v1651
    %1653 = vmatprep.subr.mxu0 0.0
    %v1654 = vand.u32 %v1186, 4294901760
    %v1655 = vsub.f32 %v1186, %v1654
    %v1656 = vand.u32 %v1655, 4294901760
    %1657 = vmatpush1.msra.mxu0 %v1656
    %1658 = vmatprep.subr.mxu0 0.0
    %v1659 = vand.u32 %v1187, 4294901760
    %v1660 = vsub.f32 %v1187, %v1659
    %v1661 = vand.u32 %v1660, 4294901760
    %1662 = vmatpush1.msra.mxu0 %v1661
    %1663 = vmatprep.subr.mxu0 0.0
    %v1664 = vand.u32 %v1188, 4294901760
    %v1665 = vsub.f32 %v1188, %v1664
    %v1666 = vand.u32 %v1665, 4294901760
    %1667 = vmatpush1.msra.mxu0 %v1666
    %1668 = vmatprep.subr.mxu0 0.0
    %v1669 = vand.u32 %v1189, 4294901760
    %v1670 = vsub.f32 %v1189, %v1669
    %v1671 = vand.u32 %v1670, 4294901760
    %1672 = vmatpush1.msra.mxu0 %v1671
    %1673 = vmatprep.subr.mxu0 0.0
    %v1674 = vand.u32 %v1190, 4294901760
    %v1675 = vsub.f32 %v1190, %v1674
    %v1676 = vand.u32 %v1675, 4294901760
    %1677 = vmatpush1.msra.mxu0 %v1676
    %1678 = vmatprep.subr.mxu0 0.0
    %v1679 = vand.u32 %v1191, 4294901760
    %v1680 = vsub.f32 %v1191, %v1679
    %v1681 = vand.u32 %v1680, 4294901760
    %1682 = vmatpush1.msra.mxu0 %v1681
    %1683 = vmatprep.subr.mxu0 0.0
    %v1684 = vand.u32 %v1192, 4294901760
    %v1685 = vsub.f32 %v1192, %v1684
    %v1686 = vand.u32 %v1685, 4294901760
    %1687 = vmatpush1.msra.mxu0 %v1686
    %1688 = vmatprep.subr.mxu0 0.0
    %v1689 = vand.u32 %v1193, 4294901760
    %v1690 = vsub.f32 %v1193, %v1689
    %v1691 = vand.u32 %v1690, 4294901760
    %1692 = vmatpush1.msra.mxu0 %v1691
    %1693 = vmatprep.subr.mxu0 0.0
    %v1694 = vand.u32 %v1194, 4294901760
    %v1695 = vsub.f32 %v1194, %v1694
    %v1696 = vand.u32 %v1695, 4294901760
    %1697 = vmatpush1.msra.mxu0 %v1696
    %1698 = vmatprep.subr.mxu0 0.0
    %v1699 = vand.u32 %v1195, 4294901760
    %v1700 = vsub.f32 %v1195, %v1699
    %v1701 = vand.u32 %v1700, 4294901760
    %1702 = vmatpush1.msra.mxu0 %v1701
    %1703 = vmatprep.subr.mxu0 0.0
    %v1704 = vand.u32 %v1196, 4294901760
    %v1705 = vsub.f32 %v1196, %v1704
    %v1706 = vand.u32 %v1705, 4294901760
    %1707 = vmatpush1.msra.mxu0 %v1706
    %1708 = vmatprep.subr.mxu0 0.0
    %v1709 = vand.u32 %v1197, 4294901760
    %v1710 = vsub.f32 %v1197, %v1709
    %v1711 = vand.u32 %v1710, 4294901760
    %1712 = vmatpush1.msra.mxu0 %v1711
    %1713 = vmatprep.subr.mxu0 0.0
    %v1714 = vand.u32 %v1198, 4294901760
    %v1715 = vsub.f32 %v1198, %v1714
    %v1716 = vand.u32 %v1715, 4294901760
    %1717 = vmatpush1.msra.mxu0 %v1716
    %1718 = vmatprep.subr.mxu0 0.0
    %v1719 = vand.u32 %v1199, 4294901760
    %v1720 = vsub.f32 %v1199, %v1719
    %v1721 = vand.u32 %v1720, 4294901760
    %1722 = vmatpush1.msra.mxu0 %v1721
    %1723 = vmatprep.subr.mxu0 0.0
    %1724 = vmatpush1.msra.mxu0 0.0
    %1725 = vmatprep.subr.mxu0 0.0
    %1726 = vmatpush1.msra.mxu0 0.0
    %1727 = vmatprep.subr.mxu0 0.0
    %1728 = vmatpush1.msra.mxu0 0.0
    %1729 = vmatprep.subr.mxu0 0.0
    %1730 = vmatpush1.msra.mxu0 0.0
    %1731 = vmatprep.subr.mxu0 0.0
    %1732 = vmatpush1.msra.mxu0 0.0
    %1733 = vmatprep.subr.mxu0 0.0
    %1734 = vmatpush1.msra.mxu0 0.0
    %1735 = vmatprep.subr.mxu0 0.0
    %1736 = vmatpush1.msra.mxu0 0.0
    %1737 = vmatprep.subr.mxu0 0.0
    %1738 = vmatpush1.msra.mxu0 0.0
    %1739 = vmatprep.subr.mxu0 0.0
    %1740 = vmatpush1.msra.mxu0 0.0
    %1741 = vmatprep.subr.mxu0 0.0
    %1742 = vmatpush1.msra.mxu0 0.0
    %1743 = vmatprep.subr.mxu0 0.0
    %1744 = vmatpush1.msra.mxu0 0.0
    %1745 = vmatprep.subr.mxu0 0.0
    %1746 = vmatpush1.msra.mxu0 0.0
    %1747 = vmatprep.subr.mxu0 0.0
    %1748 = vmatpush1.msra.mxu0 0.0
    %1749 = vmatprep.subr.mxu0 0.0
    %1750 = vmatpush1.msra.mxu0 0.0
    %1751 = vmatprep.subr.mxu0 0.0
    %1752 = vmatpush1.msra.mxu0 0.0
    %1753 = vmatprep.subr.mxu0 0.0
    %1754 = vmatpush1.msra.mxu0 0.0
    %1755 = vmatprep.mubr.f32.mxu0 0.0
    %v1756 = vand.u32 %v1182, 4294901760
    %1757 = vmatmul.mubr.f32.gmra.mrb[0].mxu0 %v1756
    %v1758 = vpop.f32.mrb[0].mxu0
    %v1759 = vadd.f32 %v1640, %v1758
    %v1760 = vpop.f32.mrb[0].mxu0
    %1761 = vdwg.mxu0
    %1762 = vmatprep.subr.mxu0 0.0
    %v1763 = vand.u32 %v1184, 4294901760
    %1764 = vmatpush1.msra.mxu0 %v1763
    %1765 = vmatprep.subr.mxu0 0.0
    %v1766 = vand.u32 %v1185, 4294901760
    %1767 = vmatpush1.msra.mxu0 %v1766
    %1768 = vmatprep.subr.mxu0 0.0
    %v1769 = vand.u32 %v1186, 4294901760
    %1770 = vmatpush1.msra.mxu0 %v1769
    %1771 = vmatprep.subr.mxu0 0.0
    %v1772 = vand.u32 %v1187, 4294901760
    %1773 = vmatpush1.msra.mxu0 %v1772
    %1774 = vmatprep.subr.mxu0 0.0
    %v1775 = vand.u32 %v1188, 4294901760
    %1776 = vmatpush1.msra.mxu0 %v1775
    %1777 = vmatprep.subr.mxu0 0.0
    %v1778 = vand.u32 %v1189, 4294901760
    %1779 = vmatpush1.msra.mxu0 %v1778
    %1780 = vmatprep.subr.mxu0 0.0
    %v1781 = vand.u32 %v1190, 4294901760
    %1782 = vmatpush1.msra.mxu0 %v1781
    %1783 = vmatprep.subr.mxu0 0.0
    %v1784 = vand.u32 %v1191, 4294901760
    %1785 = vmatpush1.msra.mxu0 %v1784
    %1786 = vmatprep.subr.mxu0 0.0
    %v1787 = vand.u32 %v1192, 4294901760
    %1788 = vmatpush1.msra.mxu0 %v1787
    %1789 = vmatprep.subr.mxu0 0.0
    %v1790 = vand.u32 %v1193, 4294901760
    %1791 = vmatpush1.msra.mxu0 %v1790
    %1792 = vmatprep.subr.mxu0 0.0
    %v1793 = vand.u32 %v1194, 4294901760
    %1794 = vmatpush1.msra.mxu0 %v1793
    %1795 = vmatprep.subr.mxu0 0.0
    %v1796 = vand.u32 %v1195, 4294901760
    %1797 = vmatpush1.msra.mxu0 %v1796
    %1798 = vmatprep.subr.mxu0 0.0
    %v1799 = vand.u32 %v1196, 4294901760
    %1800 = vmatpush1.msra.mxu0 %v1799
    %1801 = vmatprep.subr.mxu0 0.0
    %v1802 = vand.u32 %v1197, 4294901760
    %1803 = vmatpush1.msra.mxu0 %v1802
    %1804 = vmatprep.subr.mxu0 0.0
    %v1805 = vand.u32 %v1198, 4294901760
    %1806 = vmatpush1.msra.mxu0 %v1805
    %1807 = vmatprep.subr.mxu0 0.0
    %v1808 = vand.u32 %v1199, 4294901760
    %1809 = vmatpush1.msra.mxu0 %v1808
    %1810 = vmatprep.subr.mxu0 0.0
    %1811 = vmatpush1.msra.mxu0 0.0
    %1812 = vmatprep.subr.mxu0 0.0
    %1813 = vmatpush1.msra.mxu0 0.0
    %1814 = vmatprep.subr.mxu0 0.0
    %1815 = vmatpush1.msra.mxu0 0.0
    %1816 = vmatprep.subr.mxu0 0.0
    %1817 = vmatpush1.msra.mxu0 0.0
    %1818 = vmatprep.subr.mxu0 0.0
    %1819 = vmatpush1.msra.mxu0 0.0
    %1820 = vmatprep.subr.mxu0 0.0
    %1821 = vmatpush1.msra.mxu0 0.0
    %1822 = vmatprep.subr.mxu0 0.0
    %1823 = vmatpush1.msra.mxu0 0.0
    %1824 = vmatprep.subr.mxu0 0.0
    %1825 = vmatpush1.msra.mxu0 0.0
    %1826 = vmatprep.subr.mxu0 0.0
    %1827 = vmatpush1.msra.mxu0 0.0
    %1828 = vmatprep.subr.mxu0 0.0
    %1829 = vmatpush1.msra.mxu0 0.0
    %1830 = vmatprep.subr.mxu0 0.0
    %1831 = vmatpush1.msra.mxu0 0.0
    %1832 = vmatprep.subr.mxu0 0.0
    %1833 = vmatpush1.msra.mxu0 0.0
    %1834 = vmatprep.subr.mxu0 0.0
    %1835 = vmatpush1.msra.mxu0 0.0
    %1836 = vmatprep.subr.mxu0 0.0
    %1837 = vmatpush1.msra.mxu0 0.0
    %1838 = vmatprep.subr.mxu0 0.0
    %1839 = vmatpush1.msra.mxu0 0.0
    %1840 = vmatprep.subr.mxu0 0.0
    %1841 = vmatpush1.msra.mxu0 0.0
    %1842 = vmatprep.mubr.f32.mxu0 0.0
    %v1843 = vand.u32 %v1182, 4294901760
    %1844 = vmatmul.mubr.f32.gmra.mrb[0].mxu0 %v1843
    %v1845 = vpop.f32.mrb[0].mxu0
    %v1846 = vadd.f32 %v1759, %v1845
    %v1847 = vpop.f32.mrb[0].mxu0
    %1848 = vdwg.mxu0
    %vm1849 = vcmask 64512
    %1850 = vst.msk [vmem:[%s3] sm:$0xff] %vm1849, %v1846
    // Predicated region
    $region22: #{actor_critic3_forward.1} parent=1 // pred_check
      _
    $region23: #{actor_critic3_forward.1} parent=1 // pred_check_branch
      %1852 = sbr.rel (0) target = $region25
    $region24: #{actor_critic3_forward.1} parent=1 // pred_region
      _
    $region25: #{actor_critic3_forward.1} parent=1 // pred_fallthru
      _
    // Predicated region
    $region26: #{actor_critic3_forward.1} parent=1 // pred_check
      _
    $region27: #{actor_critic3_forward.1} parent=1 // pred_check_branch
      %1854 = sbr.rel (0) target = $region29
    $region28: #{actor_critic3_forward.1} parent=1 // pred_region
      _
    $region29: #{actor_critic3_forward.1} parent=1 // pred_fallthru
      _
    %1855 = vsyncpa [#allocation3], 1
    %1856 = vsyncpa [#allocation5], 1

</llo_original>
